<compile_context>
chip_gen: v6e
topology: v6e:2x2x1
jax: 0.10.0
libtpu: 0.0.40
codegen_flags: <defaults>
</compile_context>

<pallas_src>
import numpy as np
import jax
import jax.numpy as jnp
from jax.experimental import pallas as pl
from jax.experimental.pallas import tpu as pltpu


# ----------------------------------------------------------------------------
# Config (mirrors the fields the PyTorch module reads)
# ----------------------------------------------------------------------------
class Config:
    voxel_size = 0.05
    first_subsampling_dl = 0.05
    conv_radius = 2.5
    first_features_dim = 8
    kpconv_in_dim = 4
    num_kernel_points = 15
    kpconv_architecture = [
        "simple", "strided", "simple", "strided", "simple",
        "nearest_upsample", "simple", "nearest_upsample", "simple",
    ]


# ----------------------------------------------------------------------------
# Deterministic parameter construction (PyTorch layouts, mirrors block_decoder)
# ----------------------------------------------------------------------------
def _init_block(block, in_dim, out_dim, key):
    kw, kb = jax.random.split(key)
    if "simple" in block:
        # nn.Conv1d(in_dim, out_dim, kernel_size=1): weight (out, in, 1)
        w = jax.random.normal(kw, (out_dim, in_dim, 1), jnp.float32) * 0.1
        b = jax.random.normal(kb, (out_dim,), jnp.float32) * 0.1
        return {"kind": "conv_k1", "w": w, "b": b}
    elif "pool" in block or "strided" in block:
        # nn.Conv1d(in_dim, out_dim, kernel_size=2, stride=2): weight (out, in, 2)
        w = jax.random.normal(kw, (out_dim, in_dim, 2), jnp.float32) * 0.1
        b = jax.random.normal(kb, (out_dim,), jnp.float32) * 0.1
        return {"kind": "conv_k2s2", "w": w, "b": b}
    elif "upsample" in block:
        # nn.ConvTranspose1d(in_dim, out_dim, kernel_size=2, stride=2): weight (in, out, 2)
        w = jax.random.normal(kw, (in_dim, out_dim, 2), jnp.float32) * 0.1
        b = jax.random.normal(kb, (out_dim,), jnp.float32) * 0.1
        return {"kind": "deconv_k2s2", "w": w, "b": b}
    else:
        raise ValueError(f"Unknown block type: {block}")


def build_model(config, key):
    """Mirrors KpconvEncoder.__init__ / KpconvDecoder.__init__ bookkeeping."""
    arch = config.kpconv_architecture

    # ---------------- encoder ----------------
    in_dim = config.kpconv_in_dim
    out_dim = config.first_features_dim
    enc_blocks, enc_skips = [], []
    for block_i, block in enumerate(arch):
        if any(t in block for t in ("pool", "strided", "upsample", "global")):
            enc_skips.append(block_i)
        if "upsample" in block:
            break
        key, sub = jax.random.split(key)
        enc_blocks.append(_init_block(block, in_dim, out_dim, sub))
        in_dim = out_dim
        if "pool" in block or "strided" in block:
            out_dim *= 2

    # ---------------- decoder ----------------
    layer = 0
    in_dim = config.first_features_dim * 2 ** (len(arch) - 2)
    out_dim = config.first_features_dim
    dec_skip_dims, start_i = [], 0
    for block_i, block in enumerate(arch):
        if "upsample" in block:
            start_i = block_i
            break
        if any(t in block for t in ("pool", "strided", "upsample", "global")):
            dec_skip_dims.append(in_dim)
        in_dim = out_dim
        if "pool" in block or "strided" in block:
            layer += 1
            out_dim *= 2

    dec_blocks, dec_concats, dec_concat_split = [], [], {}
    for block_i, block in enumerate(arch[start_i:]):
        if block_i > 0 and "upsample" in arch[start_i + block_i - 1]:
            # how the concatenated input splits into [x | skip] channels
            dec_concat_split[block_i] = (in_dim, dec_skip_dims[layer])
            in_dim += dec_skip_dims[layer]
            dec_concats.append(block_i)
        key, sub = jax.random.split(key)
        dec_blocks.append(_init_block(block, in_dim, out_dim, sub))
        in_dim = out_dim
        if "upsample" in block:
            layer -= 1

    return enc_blocks, enc_skips, dec_blocks, dec_concats, dec_concat_split


# ----------------------------------------------------------------------------
# Build-time packing: every weight as a (P, P) tile inside ONE parameter slab
# ----------------------------------------------------------------------------
def pack_model(enc_blocks, enc_skips, dec_blocks, dec_concats,
               dec_concat_split, c_in):
    # P = padded channel dim (multiple of 8).  Padded rows/cols are zero, so
    # padded channels stay exactly zero through the whole network.
    ch = [c_in] + [int(b["b"].shape[0]) for b in enc_blocks + dec_blocks]
    P = max(8, -(-max(ch) // 8) * 8)

    mats, bias_cols, plan = [], [], []

    def add_mat(m):
        m = np.asarray(m, np.float32)
        out = np.zeros((P, P), np.float32)
        out[:m.shape[0], :m.shape[1]] = m
        mats.append(out)
        return len(mats) - 1

    def add_bias(b):
        b = np.asarray(b, np.float32)
        v = np.zeros((P,), np.float32)
        v[:b.shape[0]] = b
        bias_cols.append(v)
        return len(bias_cols) - 1

    s = 1                 # current subsample stride of the running activation
    in_rows = c_in        # row count of the in-kernel activation (C_in, then P)

    # ----- encoder -----
    for i, blk in enumerate(enc_blocks):
        push = i in enc_skips
        w = np.asarray(blk["w"], np.float32)
        b_idx = add_bias(blk["b"])
        if blk["kind"] == "conv_k1":
            plan.append(dict(kind="k1", push_skip=push, b=b_idx,
                             w=add_mat(w[:, :, 0]), in_rows=in_rows))
        else:  # conv_k2s2
            plan.append(dict(kind="k2", push_skip=push, b=b_idx,
                             w0=add_mat(w[:, :, 0]), w1=add_mat(w[:, :, 1]),
                             s_in=s, in_rows=in_rows))
            s *= 2
        in_rows = P

    # ----- decoder -----
    for i, blk in enumerate(dec_blocks):
        w = np.asarray(blk["w"], np.float32)
        b_idx = add_bias(blk["b"])
        if blk["kind"] == "deconv_k2s2":
            s //= 2
            # ConvTranspose1d weight is (C_in, C_out, 2); per-tap matmul wants (C_out, C_in)
            plan.append(dict(kind="up", push_skip=False, b=b_idx,
                             w0=add_mat(w[:, :, 0].T), w1=add_mat(w[:, :, 1].T),
                             s_out=s))
        elif i in dec_concats:
            # torch.cat([x, skip], dim=1) then Conv1d(k=1): split W into the
            # x-part and the skip-part -> no in-kernel concatenation needed.
            x_ch, _skip_ch = dec_concat_split[i]
            plan.append(dict(kind="k1cat", push_skip=False, b=b_idx,
                             wx=add_mat(w[:, :x_ch, 0]),
                             ws=add_mat(w[:, x_ch:, 0])))
        else:
            plan.append(dict(kind="k1", push_skip=False, b=b_idx,
                             w=add_mat(w[:, :, 0]), in_rows=P))
    assert s == 1, "encoder / decoder resolution mismatch"

    n_layers = len(bias_cols)
    assert n_layers <= P
    bias_mat = np.zeros((P, P), np.float32)
    for j, v in enumerate(bias_cols):
        bias_mat[:, j] = v

    slab = jnp.asarray(np.stack(mats + [bias_mat], axis=0))  # (n_mats+1, P, P)
    c_out = int(dec_blocks[-1]["b"].shape[0])
    return plan, slab, len(mats), P, c_out


# ----------------------------------------------------------------------------
# Fused Pallas kernel: whole encoder+decoder, channels-first, spatial on lanes
# ----------------------------------------------------------------------------
def make_fused_forward(plan, slab, *, B, C_in, L, C_out, P, n_mats, num_splits):
    assert B % num_splits == 0
    bpg = B // num_splits        # batch elements folded per grid step
    N = bpg * L                  # lane width of the in-kernel activation
    n_slab = slab.shape[0]

    def kernel(x_ref, slab_ref, out_ref):
        f32 = jnp.float32
        # fold this step's batch elements onto the lane (spatial) axis
        if bpg == 1:
            x = x_ref[0].astype(f32)                               # (C_in, L)
        else:
            x = jnp.concatenate([x_ref[e].astype(f32) for e in range(bpg)],
                                axis=-1)                           # (C_in, N)

        biases = slab_ref[n_mats]                                  # (P, P)
        col = jax.lax.broadcasted_iota(jnp.int32, (P, N), 1)

        def zcol(k):
            return jnp.zeros((P, k), f32)

        def shift_left(a, k):       # out[:, c] = a[:, c + k]
            return jnp.concatenate([a[:, k:], zcol(k)], axis=1)

        def shift_right(a, k):      # out[:, c] = a[:, c - k]
            return jnp.concatenate([zcol(k), a[:, :N - k]], axis=1)

        def weight(idx, in_rows):
            w = slab_ref[idx]                                      # (P, P)
            return w if in_rows == P else w[:, :in_rows]

        def mm(w, a):
            # f32 with f32 accumulation; add precision=HIGHEST for bit parity.
            return jnp.dot(w, a, preferred_element_type=f32)

        # Representation: activation kept at full lane resolution; at level l
        # only lanes with (col % 2**l == 0) are valid.  Stride-2 structure
        # never crosses a folded-batch boundary because L % 4 == 0.
        skips = []
        for blk in plan:                       # static Python -> fully unrolled
            if blk["push_skip"]:
                skips.append(x)
            b = biases[:, blk["b"]:blk["b"] + 1]                   # (P, 1)
            kind = blk["kind"]
            if kind == "k1":                   # Conv1d(kernel_size=1)
                x = mm(weight(blk["w"], blk["in_rows"]), x) + b
            elif kind == "k1cat":              # cat([x, skip], ch) + Conv1d(k=1)
                skip = skips.pop()
                x = mm(slab_ref[blk["wx"]], x) + mm(slab_ref[blk["ws"]], skip) + b
            elif kind == "k2":                 # Conv1d(kernel_size=2, stride=2)
                s = blk["s_in"]
                x = (mm(weight(blk["w0"], blk["in_rows"]), x)
                     + mm(weight(blk["w1"], blk["in_rows"]), shift_left(x, s))
                     + b)
            else:                              # "up": ConvTranspose1d(k=2, s=2)
                s = blk["s_out"]
                y0 = mm(slab_ref[blk["w0"]], x)
                y1 = mm(slab_ref[blk["w1"]], x)
                x = jnp.where((col & (2 * s - 1)) == 0, y0,
                              shift_right(y1, s)) + b

        # write the NCL output directly (no wrapper transposes)
        for e in range(bpg):
            out_ref[e] = x[:C_out, e * L:(e + 1) * L].astype(out_ref.dtype)

    fused = pl.pallas_call(
        kernel,
        out_shape=jax.ShapeDtypeStruct((B, C_out, L), jnp.float32),
        grid=(num_splits,),
        in_specs=[
            pl.BlockSpec((bpg, C_in, L), lambda g: (g, 0, 0)),
            # single parameter slab, constant index_map -> DMA'd once
            pl.BlockSpec((n_slab, P, P), lambda g: (0, 0, 0)),
        ],
        out_specs=pl.BlockSpec((bpg, C_out, L), lambda g: (g, 0, 0)),
        compiler_params=pltpu.CompilerParams(
            dimension_semantics=("parallel",)),   # feeds both v7x TensorCores
    )

    def forward(features_ncl):
        # NCL in, NCL out -- no transposes / reshapes outside the kernel.
        return fused(features_ncl.astype(jnp.float32), slab)

    return jax.jit(forward)


# ----------------------------------------------------------------------------
# Independent NumPy reference (mirrors the PyTorch forward exactly)
# ----------------------------------------------------------------------------
def reference_forward(features, enc_blocks, enc_skips, dec_blocks, dec_concats):
    def conv_k1(x, w, b):
        return np.einsum("oi,il->ol", w[:, :, 0], x) + b[:, None]

    def conv_k2s2(x, w, b):
        return (np.einsum("oi,il->ol", w[:, :, 0], x[:, 0::2])
                + np.einsum("oi,il->ol", w[:, :, 1], x[:, 1::2]) + b[:, None])

    def deconv_k2s2(x, w, b):
        out = np.zeros((w.shape[1], 2 * x.shape[1]), np.float32)
        out[:, 0::2] = np.einsum("io,il->ol", w[:, :, 0], x)
        out[:, 1::2] = np.einsum("io,il->ol", w[:, :, 1], x)
        return out + b[:, None]

    def apply(blk, x):
        w = np.asarray(blk["w"], np.float32)
        b = np.asarray(blk["b"], np.float32)
        if blk["kind"] == "conv_k1":
            return conv_k1(x, w, b)
        if blk["kind"] == "conv_k2s2":
            return conv_k2s2(x, w, b)
        return deconv_k2s2(x, w, b)

    outs = []
    for bi in range(features.shape[0]):
        x = np.asarray(features[bi], np.float32)
        skips = []
        for i, blk in enumerate(enc_blocks):
            if i in enc_skips:
                skips.append(x)
            x = apply(blk, x)
        for i, blk in enumerate(dec_blocks):
            if i in dec_concats:
                x = np.concatenate([x, skips.pop()], axis=0)
            x = apply(blk, x)
        outs.append(x)
    return np.stack(outs, axis=0)


# ----------------------------------------------------------------------------
# Main
# ----------------------------------------------------------------------------
if __name__ == "__main__":
    config = Config()
    root = jax.random.PRNGKey(0)
    k_params, k_data = jax.random.split(root)

    enc_blocks, enc_skips, dec_blocks, dec_concats, dec_concat_split = \
        build_model(config, k_params)

    # batch['features']: (B, C_in, L) -- small deterministic input
    B, C_in, L = 2, config.kpconv_in_dim, 16
    assert L % 4 == 0, "this architecture has two stride-2 levels"

    plan, slab, n_mats, P, C_out = pack_model(
        enc_blocks, enc_skips, dec_blocks, dec_concats, dec_concat_split, C_in)

    num_splits = 2 if B % 2 == 0 else 1
    forward = make_fused_forward(plan, slab, B=B, C_in=C_in, L=L, C_out=C_out,
                                 P=P, n_mats=n_mats, num_splits=num_splits)

    features = jax.random.normal(k_data, (B, C_in, L), jnp.float32)
    out = jax.block_until_ready(forward(features))

    # expected output: (B, 4 * first_features_dim, L) = (2, 32, 16)
    assert out.shape == (B, 4 * config.first_features_dim, L), out.shape
    assert bool(jnp.all(jnp.isfinite(out)))

    ref = reference_forward(np.asarray(features), enc_blocks, enc_skips,
                            dec_blocks, dec_concats)
    assert np.allclose(np.asarray(out), ref, rtol=5e-2, atol=1e-4), \
        float(np.max(np.abs(np.asarray(out) - ref)))

    print("KERNEL_OK")
</pallas_src>

<mosaic_0001>
module attributes {stable_mosaic.version = 11 : i64} {
  func.func @kernel(%arg0: i32, %arg1: memref<1x4x16xf32, #tpu.memory_space<vmem>>, %arg2: memref<16x32x32xf32, #tpu.memory_space<vmem>>, %arg3: memref<1x32x16xf32, #tpu.memory_space<vmem>>) attributes {dimension_semantics = [#tpu.dimension_semantics<parallel>], iteration_bounds = array<i64: 2>, scalar_prefetch = 0 : i64, scratch_operands = 0 : i64, tpu.core_type = #tpu.core_type<tc>, window_params = [{transform_indices = @transform_0, window_bounds = array<i64: 1, 4, 16>}, {pipeline_mode = #tpu.pipeline_mode<synchronous>, transform_indices = @transform_1, window_bounds = array<i64: 16, 32, 32>}, {transform_indices = @transform_2, window_bounds = array<i64: 1, 32, 16>}]} {
    %c0 = arith.constant 0 : index
    %c0_0 = arith.constant 0 : index
    %c0_1 = arith.constant 0 : index
    %0 = vector.load %arg1[%c0, %c0_0, %c0_1] : memref<1x4x16xf32, #tpu.memory_space<vmem>>, vector<1x4x16xf32>
    %1 = vector.shape_cast %0 : vector<1x4x16xf32> to vector<4x16xf32>
    %c15 = arith.constant 15 : index
    %c0_2 = arith.constant 0 : index
    %c0_3 = arith.constant 0 : index
    %2 = vector.load %arg2[%c15, %c0_2, %c0_3] : memref<16x32x32xf32, #tpu.memory_space<vmem>>, vector<1x32x32xf32>
    %3 = vector.shape_cast %2 : vector<1x32x32xf32> to vector<32x32xf32>
    %4 = tpu.iota {dimensions = array<i32: 1>} : vector<32x16xi32>
    %5 = vector.extract_strided_slice %3 {offsets = [0, 0], sizes = [32, 1], strides = [1, 1]} : vector<32x32xf32> to vector<32x1xf32>
    %c0_4 = arith.constant 0 : index
    %c0_5 = arith.constant 0 : index
    %c0_6 = arith.constant 0 : index
    %6 = vector.load %arg2[%c0_4, %c0_5, %c0_6] : memref<16x32x32xf32, #tpu.memory_space<vmem>>, vector<1x32x32xf32>
    %7 = vector.shape_cast %6 : vector<1x32x32xf32> to vector<32x32xf32>
    %8 = vector.extract_strided_slice %7 {offsets = [0, 0], sizes = [32, 4], strides = [1, 1]} : vector<32x32xf32> to vector<32x4xf32>
    %cst = arith.constant dense<0.000000e+00> : vector<32x16xf32>
    %9 = tpu.matmul %8, %1, %cst {dimension_numbers = #tpu.dot_dimension_numbers<[1], [0], [0], [1], [0, 0, 1, 1], [], []>} : vector<32x4xf32>, vector<4x16xf32>, vector<32x16xf32> -> vector<32x16xf32>
    %10 = vector.broadcast %5 : vector<32x1xf32> to vector<32x16xf32>
    %11 = arith.addf %9, %10 : vector<32x16xf32>
    %12 = vector.extract_strided_slice %3 {offsets = [0, 1], sizes = [32, 1], strides = [1, 1]} : vector<32x32xf32> to vector<32x1xf32>
    %c1 = arith.constant 1 : index
    %c0_7 = arith.constant 0 : index
    %c0_8 = arith.constant 0 : index
    %13 = vector.load %arg2[%c1, %c0_7, %c0_8] : memref<16x32x32xf32, #tpu.memory_space<vmem>>, vector<1x32x32xf32>
    %14 = vector.shape_cast %13 : vector<1x32x32xf32> to vector<32x32xf32>
    %cst_9 = arith.constant dense<0.000000e+00> : vector<32x16xf32>
    %15 = tpu.matmul %14, %11, %cst_9 {dimension_numbers = #tpu.dot_dimension_numbers<[1], [0], [0], [1], [0, 0, 1, 1], [], []>} : vector<32x32xf32>, vector<32x16xf32>, vector<32x16xf32> -> vector<32x16xf32>
    %c2 = arith.constant 2 : index
    %c0_10 = arith.constant 0 : index
    %c0_11 = arith.constant 0 : index
    %16 = vector.load %arg2[%c2, %c0_10, %c0_11] : memref<16x32x32xf32, #tpu.memory_space<vmem>>, vector<1x32x32xf32>
    %17 = vector.shape_cast %16 : vector<1x32x32xf32> to vector<32x32xf32>
    %18 = vector.extract_strided_slice %11 {offsets = [0, 1], sizes = [32, 15], strides = [1, 1]} : vector<32x16xf32> to vector<32x15xf32>
    %cst_12 = arith.constant 0.000000e+00 : f32
    %19 = vector.broadcast %cst_12 : f32 to vector<32x1xf32>
    %20 = tpu.concatenate %18, %19 in 1 : vector<32x15xf32>, vector<32x1xf32> -> vector<32x16xf32>
    %cst_13 = arith.constant dense<0.000000e+00> : vector<32x16xf32>
    %21 = tpu.matmul %17, %20, %cst_13 {dimension_numbers = #tpu.dot_dimension_numbers<[1], [0], [0], [1], [0, 0, 1, 1], [], []>} : vector<32x32xf32>, vector<32x16xf32>, vector<32x16xf32> -> vector<32x16xf32>
    %22 = arith.addf %15, %21 : vector<32x16xf32>
    %23 = vector.broadcast %12 : vector<32x1xf32> to vector<32x16xf32>
    %24 = arith.addf %22, %23 : vector<32x16xf32>
    %25 = vector.extract_strided_slice %3 {offsets = [0, 2], sizes = [32, 1], strides = [1, 1]} : vector<32x32xf32> to vector<32x1xf32>
    %c3 = arith.constant 3 : index
    %c0_14 = arith.constant 0 : index
    %c0_15 = arith.constant 0 : index
    %26 = vector.load %arg2[%c3, %c0_14, %c0_15] : memref<16x32x32xf32, #tpu.memory_space<vmem>>, vector<1x32x32xf32>
    %27 = vector.shape_cast %26 : vector<1x32x32xf32> to vector<32x32xf32>
    %cst_16 = arith.constant dense<0.000000e+00> : vector<32x16xf32>
    %28 = tpu.matmul %27, %24, %cst_16 {dimension_numbers = #tpu.dot_dimension_numbers<[1], [0], [0], [1], [0, 0, 1, 1], [], []>} : vector<32x32xf32>, vector<32x16xf32>, vector<32x16xf32> -> vector<32x16xf32>
    %29 = vector.broadcast %25 : vector<32x1xf32> to vector<32x16xf32>
    %30 = arith.addf %28, %29 : vector<32x16xf32>
    %31 = vector.extract_strided_slice %3 {offsets = [0, 3], sizes = [32, 1], strides = [1, 1]} : vector<32x32xf32> to vector<32x1xf32>
    %c4 = arith.constant 4 : index
    %c0_17 = arith.constant 0 : index
    %c0_18 = arith.constant 0 : index
    %32 = vector.load %arg2[%c4, %c0_17, %c0_18] : memref<16x32x32xf32, #tpu.memory_space<vmem>>, vector<1x32x32xf32>
    %33 = vector.shape_cast %32 : vector<1x32x32xf32> to vector<32x32xf32>
    %cst_19 = arith.constant dense<0.000000e+00> : vector<32x16xf32>
    %34 = tpu.matmul %33, %30, %cst_19 {dimension_numbers = #tpu.dot_dimension_numbers<[1], [0], [0], [1], [0, 0, 1, 1], [], []>} : vector<32x32xf32>, vector<32x16xf32>, vector<32x16xf32> -> vector<32x16xf32>
    %c5 = arith.constant 5 : index
    %c0_20 = arith.constant 0 : index
    %c0_21 = arith.constant 0 : index
    %35 = vector.load %arg2[%c5, %c0_20, %c0_21] : memref<16x32x32xf32, #tpu.memory_space<vmem>>, vector<1x32x32xf32>
    %36 = vector.shape_cast %35 : vector<1x32x32xf32> to vector<32x32xf32>
    %37 = vector.extract_strided_slice %30 {offsets = [0, 2], sizes = [32, 14], strides = [1, 1]} : vector<32x16xf32> to vector<32x14xf32>
    %cst_22 = arith.constant 0.000000e+00 : f32
    %38 = vector.broadcast %cst_22 : f32 to vector<32x2xf32>
    %39 = tpu.concatenate %37, %38 in 1 : vector<32x14xf32>, vector<32x2xf32> -> vector<32x16xf32>
    %cst_23 = arith.constant dense<0.000000e+00> : vector<32x16xf32>
    %40 = tpu.matmul %36, %39, %cst_23 {dimension_numbers = #tpu.dot_dimension_numbers<[1], [0], [0], [1], [0, 0, 1, 1], [], []>} : vector<32x32xf32>, vector<32x16xf32>, vector<32x16xf32> -> vector<32x16xf32>
    %41 = arith.addf %34, %40 : vector<32x16xf32>
    %42 = vector.broadcast %31 : vector<32x1xf32> to vector<32x16xf32>
    %43 = arith.addf %41, %42 : vector<32x16xf32>
    %44 = vector.extract_strided_slice %3 {offsets = [0, 4], sizes = [32, 1], strides = [1, 1]} : vector<32x32xf32> to vector<32x1xf32>
    %c6 = arith.constant 6 : index
    %c0_24 = arith.constant 0 : index
    %c0_25 = arith.constant 0 : index
    %45 = vector.load %arg2[%c6, %c0_24, %c0_25] : memref<16x32x32xf32, #tpu.memory_space<vmem>>, vector<1x32x32xf32>
    %46 = vector.shape_cast %45 : vector<1x32x32xf32> to vector<32x32xf32>
    %cst_26 = arith.constant dense<0.000000e+00> : vector<32x16xf32>
    %47 = tpu.matmul %46, %43, %cst_26 {dimension_numbers = #tpu.dot_dimension_numbers<[1], [0], [0], [1], [0, 0, 1, 1], [], []>} : vector<32x32xf32>, vector<32x16xf32>, vector<32x16xf32> -> vector<32x16xf32>
    %48 = vector.broadcast %44 : vector<32x1xf32> to vector<32x16xf32>
    %49 = arith.addf %47, %48 : vector<32x16xf32>
    %50 = vector.extract_strided_slice %3 {offsets = [0, 5], sizes = [32, 1], strides = [1, 1]} : vector<32x32xf32> to vector<32x1xf32>
    %c7 = arith.constant 7 : index
    %c0_27 = arith.constant 0 : index
    %c0_28 = arith.constant 0 : index
    %51 = vector.load %arg2[%c7, %c0_27, %c0_28] : memref<16x32x32xf32, #tpu.memory_space<vmem>>, vector<1x32x32xf32>
    %52 = vector.shape_cast %51 : vector<1x32x32xf32> to vector<32x32xf32>
    %cst_29 = arith.constant dense<0.000000e+00> : vector<32x16xf32>
    %53 = tpu.matmul %52, %49, %cst_29 {dimension_numbers = #tpu.dot_dimension_numbers<[1], [0], [0], [1], [0, 0, 1, 1], [], []>} : vector<32x32xf32>, vector<32x16xf32>, vector<32x16xf32> -> vector<32x16xf32>
    %c8 = arith.constant 8 : index
    %c0_30 = arith.constant 0 : index
    %c0_31 = arith.constant 0 : index
    %54 = vector.load %arg2[%c8, %c0_30, %c0_31] : memref<16x32x32xf32, #tpu.memory_space<vmem>>, vector<1x32x32xf32>
    %55 = vector.shape_cast %54 : vector<1x32x32xf32> to vector<32x32xf32>
    %cst_32 = arith.constant dense<0.000000e+00> : vector<32x16xf32>
    %56 = tpu.matmul %55, %49, %cst_32 {dimension_numbers = #tpu.dot_dimension_numbers<[1], [0], [0], [1], [0, 0, 1, 1], [], []>} : vector<32x32xf32>, vector<32x16xf32>, vector<32x16xf32> -> vector<32x16xf32>
    %c3_i32 = arith.constant 3 : i32
    %57 = vector.broadcast %c3_i32 : i32 to vector<32x16xi32>
    %58 = arith.andi %4, %57 : vector<32x16xi32>
    %c0_i32 = arith.constant 0 : i32
    %59 = vector.broadcast %c0_i32 : i32 to vector<32x16xi32>
    %60 = arith.cmpi eq, %58, %59 : vector<32x16xi32>
    %cst_33 = arith.constant 0.000000e+00 : f32
    %61 = vector.broadcast %cst_33 : f32 to vector<32x2xf32>
    %62 = vector.extract_strided_slice %56 {offsets = [0, 0], sizes = [32, 14], strides = [1, 1]} : vector<32x16xf32> to vector<32x14xf32>
    %63 = tpu.concatenate %61, %62 in 1 : vector<32x2xf32>, vector<32x14xf32> -> vector<32x16xf32>
    %64 = arith.select %60, %53, %63 : vector<32x16xi1>, vector<32x16xf32>
    %65 = vector.broadcast %50 : vector<32x1xf32> to vector<32x16xf32>
    %66 = arith.addf %64, %65 : vector<32x16xf32>
    %67 = vector.extract_strided_slice %3 {offsets = [0, 6], sizes = [32, 1], strides = [1, 1]} : vector<32x32xf32> to vector<32x1xf32>
    %c9 = arith.constant 9 : index
    %c0_34 = arith.constant 0 : index
    %c0_35 = arith.constant 0 : index
    %68 = vector.load %arg2[%c9, %c0_34, %c0_35] : memref<16x32x32xf32, #tpu.memory_space<vmem>>, vector<1x32x32xf32>
    %69 = vector.shape_cast %68 : vector<1x32x32xf32> to vector<32x32xf32>
    %cst_36 = arith.constant dense<0.000000e+00> : vector<32x16xf32>
    %70 = tpu.matmul %69, %66, %cst_36 {dimension_numbers = #tpu.dot_dimension_numbers<[1], [0], [0], [1], [0, 0, 1, 1], [], []>} : vector<32x32xf32>, vector<32x16xf32>, vector<32x16xf32> -> vector<32x16xf32>
    %c10 = arith.constant 10 : index
    %c0_37 = arith.constant 0 : index
    %c0_38 = arith.constant 0 : index
    %71 = vector.load %arg2[%c10, %c0_37, %c0_38] : memref<16x32x32xf32, #tpu.memory_space<vmem>>, vector<1x32x32xf32>
    %72 = vector.shape_cast %71 : vector<1x32x32xf32> to vector<32x32xf32>
    %cst_39 = arith.constant dense<0.000000e+00> : vector<32x16xf32>
    %73 = tpu.matmul %72, %30, %cst_39 {dimension_numbers = #tpu.dot_dimension_numbers<[1], [0], [0], [1], [0, 0, 1, 1], [], []>} : vector<32x32xf32>, vector<32x16xf32>, vector<32x16xf32> -> vector<32x16xf32>
    %74 = arith.addf %70, %73 : vector<32x16xf32>
    %75 = vector.broadcast %67 : vector<32x1xf32> to vector<32x16xf32>
    %76 = arith.addf %74, %75 : vector<32x16xf32>
    %77 = vector.extract_strided_slice %3 {offsets = [0, 7], sizes = [32, 1], strides = [1, 1]} : vector<32x32xf32> to vector<32x1xf32>
    %c11 = arith.constant 11 : index
    %c0_40 = arith.constant 0 : index
    %c0_41 = arith.constant 0 : index
    %78 = vector.load %arg2[%c11, %c0_40, %c0_41] : memref<16x32x32xf32, #tpu.memory_space<vmem>>, vector<1x32x32xf32>
    %79 = vector.shape_cast %78 : vector<1x32x32xf32> to vector<32x32xf32>
    %cst_42 = arith.constant dense<0.000000e+00> : vector<32x16xf32>
    %80 = tpu.matmul %79, %76, %cst_42 {dimension_numbers = #tpu.dot_dimension_numbers<[1], [0], [0], [1], [0, 0, 1, 1], [], []>} : vector<32x32xf32>, vector<32x16xf32>, vector<32x16xf32> -> vector<32x16xf32>
    %c12 = arith.constant 12 : index
    %c0_43 = arith.constant 0 : index
    %c0_44 = arith.constant 0 : index
    %81 = vector.load %arg2[%c12, %c0_43, %c0_44] : memref<16x32x32xf32, #tpu.memory_space<vmem>>, vector<1x32x32xf32>
    %82 = vector.shape_cast %81 : vector<1x32x32xf32> to vector<32x32xf32>
    %cst_45 = arith.constant dense<0.000000e+00> : vector<32x16xf32>
    %83 = tpu.matmul %82, %76, %cst_45 {dimension_numbers = #tpu.dot_dimension_numbers<[1], [0], [0], [1], [0, 0, 1, 1], [], []>} : vector<32x32xf32>, vector<32x16xf32>, vector<32x16xf32> -> vector<32x16xf32>
    %c1_i32 = arith.constant 1 : i32
    %84 = vector.broadcast %c1_i32 : i32 to vector<32x16xi32>
    %85 = arith.andi %4, %84 : vector<32x16xi32>
    %c0_i32_46 = arith.constant 0 : i32
    %86 = vector.broadcast %c0_i32_46 : i32 to vector<32x16xi32>
    %87 = arith.cmpi eq, %85, %86 : vector<32x16xi32>
    %cst_47 = arith.constant 0.000000e+00 : f32
    %88 = vector.broadcast %cst_47 : f32 to vector<32x1xf32>
    %89 = vector.extract_strided_slice %83 {offsets = [0, 0], sizes = [32, 15], strides = [1, 1]} : vector<32x16xf32> to vector<32x15xf32>
    %90 = tpu.concatenate %88, %89 in 1 : vector<32x1xf32>, vector<32x15xf32> -> vector<32x16xf32>
    %91 = arith.select %87, %80, %90 : vector<32x16xi1>, vector<32x16xf32>
    %92 = vector.broadcast %77 : vector<32x1xf32> to vector<32x16xf32>
    %93 = arith.addf %91, %92 : vector<32x16xf32>
    %94 = vector.extract_strided_slice %3 {offsets = [0, 8], sizes = [32, 1], strides = [1, 1]} : vector<32x32xf32> to vector<32x1xf32>
    %c13 = arith.constant 13 : index
    %c0_48 = arith.constant 0 : index
    %c0_49 = arith.constant 0 : index
    %95 = vector.load %arg2[%c13, %c0_48, %c0_49] : memref<16x32x32xf32, #tpu.memory_space<vmem>>, vector<1x32x32xf32>
    %96 = vector.shape_cast %95 : vector<1x32x32xf32> to vector<32x32xf32>
    %cst_50 = arith.constant dense<0.000000e+00> : vector<32x16xf32>
    %97 = tpu.matmul %96, %93, %cst_50 {dimension_numbers = #tpu.dot_dimension_numbers<[1], [0], [0], [1], [0, 0, 1, 1], [], []>} : vector<32x32xf32>, vector<32x16xf32>, vector<32x16xf32> -> vector<32x16xf32>
    %c14 = arith.constant 14 : index
    %c0_51 = arith.constant 0 : index
    %c0_52 = arith.constant 0 : index
    %98 = vector.load %arg2[%c14, %c0_51, %c0_52] : memref<16x32x32xf32, #tpu.memory_space<vmem>>, vector<1x32x32xf32>
    %99 = vector.shape_cast %98 : vector<1x32x32xf32> to vector<32x32xf32>
    %cst_53 = arith.constant dense<0.000000e+00> : vector<32x16xf32>
    %100 = tpu.matmul %99, %11, %cst_53 {dimension_numbers = #tpu.dot_dimension_numbers<[1], [0], [0], [1], [0, 0, 1, 1], [], []>} : vector<32x32xf32>, vector<32x16xf32>, vector<32x16xf32> -> vector<32x16xf32>
    %101 = arith.addf %97, %100 : vector<32x16xf32>
    %102 = vector.broadcast %94 : vector<32x1xf32> to vector<32x16xf32>
    %103 = arith.addf %101, %102 : vector<32x16xf32>
    %c0_54 = arith.constant 0 : index
    %c0_55 = arith.constant 0 : index
    %c0_56 = arith.constant 0 : index
    %104 = vector.load %arg3[%c0_54, %c0_55, %c0_56] : memref<1x32x16xf32, #tpu.memory_space<vmem>>, vector<1x32x16xf32>
    %105 = vector.shape_cast %104 : vector<1x32x16xf32> to vector<32x16xf32>
    %106 = vector.shape_cast %103 : vector<32x16xf32> to vector<1x32x16xf32>
    tpu.vector_store %arg3[%c0_54, %c0_55, %c0_56], %106 {strides = array<i32>} : memref<1x32x16xf32, #tpu.memory_space<vmem>>, vector<1x32x16xf32>,
    return
  }
  func.func @transform_0(%arg0: i32) -> (i32, i32, i32) {
    %c0_i32 = arith.constant 0 : i32
    %c0_i32_0 = arith.constant 0 : i32
    %c0_i32_1 = arith.constant 0 : i32
    return %arg0, %c0_i32, %c0_i32_0 : i32, i32, i32
  }
  func.func @transform_1(%arg0: i32) -> (i32, i32, i32) {
    %c0_i32 = arith.constant 0 : i32
    %c0_i32_0 = arith.constant 0 : i32
    %c0_i32_1 = arith.constant 0 : i32
    %c0_i32_2 = arith.constant 0 : i32
    return %c0_i32, %c0_i32_0, %c0_i32_1 : i32, i32, i32
  }
  func.func @transform_2(%arg0: i32) -> (i32, i32, i32) {
    %c0_i32 = arith.constant 0 : i32
    %c0_i32_0 = arith.constant 0 : i32
    %c0_i32_1 = arith.constant 0 : i32
    return %arg0, %c0_i32, %c0_i32_0 : i32, i32, i32
  }
}

</mosaic_0001>

<llo_original>
// kernel: forward.1
$region0: #{forward.1}
  #allocation0 [shape = 'u32[]', space=smem, size = 0x4, offset = 0x4, fixed_abs, tag = 'smem constant byte address 0x4 - core index']
  #allocation1 [shape = 'u32[144,128]{1,0:T(1,128)}', space=vmem, size = 0x12000, scoped, tag = 'internal scratch']
  %s0 = inlined_call_operand.hbm [shape: f32[2,4,16], index: 0, kind: input, shape index: {}]
  %s1 = inlined_call_operand.hbm [shape: f32[16,32,32], index: 1, kind: input, shape index: {}]
  %s2 = inlined_call_operand.vmem [shape: f32[2,32,16], index: 2, kind: output, shape index: {}]
  %s3 = sld [smem:[#allocation0]]
  $region49: #{forward.1} parent=0
    _
  %s5 = ssub.s32 1, %s3
  %s6 = scalar_select 0, %s5, %s3
  $region1: #{forward.1} parent=0
    #allocation2 [shape = 'u8[4096]{0}', space=vmem, size = 0x1000, scoped, tag = 'input window, operand 0']
    #allocation3 [shape = 's32[2]{0}', space=sflag, size = 0x8, scoped, tag = 'scoped memory for forward.1']
    #allocation4 [shape = 'u8[262144]{0}', space=vmem, size = 0x40000, scoped, tag = 'input window, operand 1, single buffered']
    #allocation5 [shape = 's32[1]{0}', space=sflag, size = 0x4, scoped, tag = 'scoped memory for forward.1']
    %7 = vsyncpa [#allocation3], 0
    %s8 = scalar_lea.sflag [#allocation3], 1
    %9 = vsyncpa %s8, 0
    %10 = vsyncpa [#allocation5], 0
    loop: start=0, step=1, limit=4
    $region2: #{forward.1} parent=1 // loop_pre_header
      _
    $region3: #{forward.1} parent=1 // loop_header
      %s12 = sphi 0, %s16
      %p13 = scmp.ge.s32.totalorder %s12, 4
      %s22 = sphi 0, %s24
      %s25 = sphi 0, %s22
      %s26 = sphi 0, %s25
      %s42 = sphi 0, %s26
      %s46 = sphi 0, %s46
      %s48 = sphi 0, %s46
      %s49 = sphi 0, %s48
      %s63 = sphi 0, %s49
      %s69 = sphi 0, %s71
      %s72 = sphi 0, %s69
      %s73 = sphi 0, %s72
      %s89 = sphi 0, %s73
    $region4: #{forward.1} parent=1 // loop_header_branch
      %15 = sbr.rel (%p13) target = $region8
    $region5: #{forward.1} parent=1 // loop_body
      %s17 = ssub.s32 %s12, 1
      %s18 = ssub.s32 %s12, 2
      %s19 = sadd.s32 %s12, 1
      %s20 = ssub.s32 %s12, %s19
      %p21 = scmp.eq.s32.totalorder %s20, 0
      %s23 = sadd.s32 %s22, 1
      %s24 = scalar_select %p21, %s22, %s23
      %p27 = pneg %p21
      %p28 = scmp.eq.s32.totalorder %s12, 1
      %p29 = por %p27, %p28
      %p30 = scmp.ne.s32.totalorder %s22, %s25
      %p31 = scmp.eq.s32.totalorder %s12, 0
      %p32 = por %p30, %p31
      %p33 = scmp.ne.s32.totalorder %s22, %s25
      %p34 = scmp.eq.s32.totalorder %s17, 1
      %p35 = por %p33, %p34
      %p36 = scmp.ne.s32.totalorder %s25, %s26
      %p37 = scmp.eq.s32.totalorder %s17, 0
      %p38 = por %p36, %p37
      %p39 = scmp.ne.s32.totalorder %s25, %s26
      %p40 = scmp.eq.s32.totalorder %s18, 1
      %p41 = por %p39, %p40
      %p43 = scmp.ne.s32.totalorder %s26, %s42
      %p44 = scmp.eq.s32.totalorder %s18, 0
      %p45 = por %p43, %p44
      %s47 = sadd.s32 %s46, 1
      %p50 = scmp.eq.s32.totalorder %s12, 1
      %p51 = scmp.ne.s32.totalorder %s46, %s48
      %p52 = scmp.eq.s32.totalorder %s12, 0
      %p53 = por %p51, %p52
      %p54 = scmp.ne.s32.totalorder %s46, %s48
      %p55 = scmp.eq.s32.totalorder %s17, 1
      %p56 = por %p54, %p55
      %p57 = scmp.ne.s32.totalorder %s48, %s49
      %p58 = scmp.eq.s32.totalorder %s17, 0
      %p59 = por %p57, %p58
      %p60 = scmp.ne.s32.totalorder %s48, %s49
      %p61 = scmp.eq.s32.totalorder %s18, 1
      %p62 = por %p60, %p61
      %p64 = scmp.ne.s32.totalorder %s49, %s63
      %p65 = scmp.eq.s32.totalorder %s18, 0
      %p66 = por %p64, %p65
      %s67 = ssub.s32 %s12, %s19
      %p68 = scmp.eq.s32.totalorder %s67, 0
      %s70 = sadd.s32 %s69, 1
      %s71 = scalar_select %p68, %s69, %s70
      %p74 = pneg %p68
      %p75 = scmp.eq.s32.totalorder %s12, 1
      %p76 = por %p74, %p75
      %p77 = scmp.ne.s32.totalorder %s69, %s72
      %p78 = scmp.eq.s32.totalorder %s12, 0
      %p79 = por %p77, %p78
      %p80 = scmp.ne.s32.totalorder %s69, %s72
      %p81 = scmp.eq.s32.totalorder %s17, 1
      %p82 = por %p80, %p81
      %p83 = scmp.ne.s32.totalorder %s72, %s73
      %p84 = scmp.eq.s32.totalorder %s17, 0
      %p85 = por %p83, %p84
      %p86 = scmp.ne.s32.totalorder %s72, %s73
      %p87 = scmp.eq.s32.totalorder %s18, 1
      %p88 = por %p86, %p87
      %p90 = scmp.ne.s32.totalorder %s73, %s89
      %p91 = scmp.eq.s32.totalorder %s18, 0
      %p92 = por %p90, %p91
      %p93 = scmp.le.s32.totalorder 1, %s12
      %p94 = scmp.lt.s32.totalorder %s12, 3
      %p95 = pnand %p93, %p94
      %p96 = pneg %p95
      // Predicated region
      $region9: #{forward.1} parent=5 // pred_check
        _
      $region10: #{forward.1} parent=5 // pred_check_branch
        %98 = sbr.rel (%p95) target = $region12
      $region11: #{forward.1} parent=5 // pred_region
        %s99 = ssub.s32 %s12, 1
        // Predicated region
        $region13: #{forward.1} parent=11 // pred_check
          %p100 = pneg %p59
        $region14: #{forward.1} parent=11 // pred_check_branch
          %102 = sbr.rel (%p100) target = $region16
        $region15: #{forward.1} parent=11 // pred_region
          %s104 = ssub.s32 8192, 8192
          %105 = vsyncadd [#allocation5], %s104
          %s106 = sshll.u32 [#allocation4], 4
          %s107 = int_to_ptr.vmem [resolvable:$true] %s106
          %112 = dma.hbm_to_vmem [thread:$0]  %s1, 8192, %s107, [#allocation5], 128, 128, 8
        $region16: #{forward.1} parent=11 // pred_fallthru
          _
      $region12: #{forward.1} parent=5 // pred_fallthru
        _
      %p113 = scmp.lt.s32.totalorder %s12, 2
      // Predicated region
      $region17: #{forward.1} parent=5 // pred_check
        %p114 = pneg %p113
      $region18: #{forward.1} parent=5 // pred_check_branch
        %116 = sbr.rel (%p114) target = $region20
      $region19: #{forward.1} parent=5 // pred_region
        // Predicated region
        $region21: #{forward.1} parent=19 // pred_check
          %p117 = pneg %p32
        $region22: #{forward.1} parent=19 // pred_check_branch
          %119 = sbr.rel (%p117) target = $region24
        $region23: #{forward.1} parent=19 // pred_region
          %s120 = sand.u32 %s22, 1
          %s121 = scalar_lea.sflag [#allocation3], %s120
          %s122 = sand.u32 %s22, 1
          %s123 = smul.addr %s122, 4
          %s124 = scalar_lea.vmem [#allocation2], %s123
          %s126 = ssub.s32 64, 64
          %127 = vsyncadd %s121, %s126
          %s128 = smul.addr %s12, 64
          %s129 = scalar_lea.hbm %s0, %s128
          %s131 = sshll.u32 %s124, 4
          %s132 = int_to_ptr.vmem [resolvable:$true] %s131
          %134 = dma.hbm_to_vmem [thread:$0]  %s129, 64, %s132, %s121
        $region24: #{forward.1} parent=19 // pred_fallthru
          _
      $region20: #{forward.1} parent=5 // pred_fallthru
        _
      %p135 = scmp.le.s32.totalorder 1, %s12
      %p136 = scmp.lt.s32.totalorder %s12, 3
      %p137 = pnand %p135, %p136
      %p138 = pneg %p137
      // Predicated region
      $region25: #{forward.1} parent=5 // pred_check
        _
      $region26: #{forward.1} parent=5 // pred_check_branch
        %140 = sbr.rel (%p137) target = $region28
      $region27: #{forward.1} parent=5 // pred_region
        %s141 = ssub.s32 %s12, 1
        %s142 = sand.u32 %s25, 1
        %s143 = scalar_lea.sflag [#allocation3], %s142
        %s144 = sand.u32 %s25, 1
        %s145 = smul.addr %s144, 4
        %s146 = scalar_lea.vmem [#allocation2], %s145
        // Predicated region
        $region29: #{forward.1} parent=27 // pred_check
          %p147 = pneg %p38
        $region30: #{forward.1} parent=27 // pred_check_branch
          %149 = sbr.rel (%p147) target = $region32
        $region31: #{forward.1} parent=27 // pred_region
          %150 = dma.done %s143, 64
        $region32: #{forward.1} parent=27 // pred_fallthru
          _
        // Predicated region
        $region33: #{forward.1} parent=27 // pred_check
          %p151 = pneg %p59
        $region34: #{forward.1} parent=27 // pred_check_branch
          %153 = sbr.rel (%p151) target = $region36
        $region35: #{forward.1} parent=27 // pred_region
          %154 = dma.done [#allocation5], 8192
        $region36: #{forward.1} parent=27 // pred_fallthru
          _
        %s155 = sand.u32 %s25, 1
        %s156 = scalar_lea.sflag [#allocation3], %s155
        %s157 = sand.u32 %s25, 1
        %s158 = smul.addr %s157, 4
        %s159 = scalar_lea.vmem [#allocation2], %s158
        %p160 = pneg %p38
        %p161 = pneg %p35
        %p162 = pneg %p59
        %p163 = pneg %p56
        %p164 = pneg %p85
        %p165 = pneg %p82
        %p166 = scmp.lt.s32.totalorder %s17, 1
        %s167 = scalar_select %p166, %s17, 1
        %s168 = smul.addr %s167, 4
        %s169 = smul.addr %s168, 8
        %s170 = scalar_lea.vmem %s2, %s169
        %p171 = scmp.lt.s32.totalorder %s17, 1
        %s172 = scalar_select %p171, %s17, 1
        %s173 = smul.addr %s172, 4
        %s174 = smul.addr %s173, 8
        %s175 = scalar_lea.vmem %s2, %s174
        %v176 = vld [vmem:[%s146] sm:$0xf]
        %s177 = scalar_lea.vmem [#allocation4], 480
        %v178 = vld [vmem:[%s177] sm:$0xff]
        %v179 = vld [vmem:[%s177 + $0x8] sm:$0xff]
        %v180 = vld [vmem:[%s177 + $0x10] sm:$0xff]
        %v181 = vld [vmem:[%s177 + $0x18] sm:$0xff]
        %v182 = vlaneseq
        %v183 = vand.u32 %v182, 127
        %v184 = vld [vmem:[#allocation4] sm:$0xff]
        %v185 = vld [vmem:[#allocation4 + $0x8] sm:$0xff]
        %v186 = vld [vmem:[#allocation4 + $0x10] sm:$0xff]
        %v187 = vld [vmem:[#allocation4 + $0x18] sm:$0xff]
        %189 = vset.pattern.permute.xlu0 0
        %190 = vperm.xlu0 %189, %v178
        %v191 = vpop.permute.xlu0 %190
        %194 = vset.pattern.permute.xlu0 0
        %195 = vperm.xlu0 %194, %v179
        %v196 = vpop.permute.xlu0 %195
        %199 = vset.pattern.permute.xlu0 0
        %200 = vperm.xlu0 %199, %v180
        %v201 = vpop.permute.xlu0 %200
        %204 = vset.pattern.permute.xlu0 0
        %205 = vperm.xlu0 %204, %v181
        %v206 = vpop.permute.xlu0 %205
        %vm208 = vcmask 31744
        %v210 = vsel %vm208, %v184, 0
        %v213 = vsel %vm208, %v185, 0
        %v216 = vsel %vm208, %v186, 0
        %v219 = vsel %vm208, %v187, 0
        %vm221 = vcmask 1043456
        %v223 = vsel %vm221, %v176, 0
        %225 = vmatprep.subr.mxu0 0.0
        %226 = vmatpush1.msra.mxu0 0.0
        %227 = vmatprep.subr.mxu0 0.0
        %228 = vmatpush1.msra.mxu0 0.0
        %229 = vmatprep.subr.mxu0 0.0
        %230 = vmatpush1.msra.mxu0 0.0
        %231 = vmatprep.subr.mxu0 0.0
        %232 = vmatpush1.msra.mxu0 0.0
        %233 = vmatprep.subr.mxu0 0.0
        %234 = vmatpush1.msra.mxu0 0.0
        %235 = vmatprep.subr.mxu0 0.0
        %236 = vmatpush1.msra.mxu0 0.0
        %237 = vmatprep.subr.mxu0 0.0
        %238 = vmatpush1.msra.mxu0 0.0
        %239 = vmatprep.subr.mxu0 0.0
        %240 = vmatpush1.msra.mxu0 0.0
        %241 = vmatprep.subr.mxu0 0.0
        %242 = vmatpush1.msra.mxu0 0.0
        %243 = vmatprep.subr.mxu0 0.0
        %244 = vmatpush1.msra.mxu0 0.0
        %245 = vmatprep.subr.mxu0 0.0
        %246 = vmatpush1.msra.mxu0 0.0
        %247 = vmatprep.subr.mxu0 0.0
        %248 = vmatpush1.msra.mxu0 0.0
        %249 = vmatprep.subr.mxu0 0.0
        %250 = vmatpush1.msra.mxu0 0.0
        %251 = vmatprep.subr.mxu0 0.0
        %252 = vmatpush1.msra.mxu0 0.0
        %253 = vmatprep.subr.mxu0 0.0
        %254 = vmatpush1.msra.mxu0 0.0
        %255 = vmatprep.subr.mxu0 0.0
        %256 = vmatpush1.msra.mxu0 %v223
        %257 = vmatprep.subr.mxu0 0.0
        %258 = vmatpush2.msra.mxu0 0.0
        %259 = vmatprep.subr.mxu0 0.0
        %260 = vmatpush2.msra.mxu0 0.0
        %261 = vmatprep.subr.mxu0 0.0
        %262 = vmatpush2.msra.mxu0 0.0
        %263 = vmatprep.subr.mxu0 0.0
        %264 = vmatpush2.msra.mxu0 0.0
        %265 = vmatprep.subr.mxu0 0.0
        %266 = vmatpush2.msra.mxu0 0.0
        %267 = vmatprep.subr.mxu0 0.0
        %268 = vmatpush2.msra.mxu0 0.0
        %269 = vmatprep.subr.mxu0 0.0
        %270 = vmatpush2.msra.mxu0 0.0
        %271 = vmatprep.subr.mxu0 0.0
        %272 = vmatpush2.msra.mxu0 0.0
        %273 = vmatprep.subr.mxu0 0.0
        %274 = vmatpush2.msra.mxu0 0.0
        %275 = vmatprep.subr.mxu0 0.0
        %276 = vmatpush2.msra.mxu0 0.0
        %277 = vmatprep.subr.mxu0 0.0
        %278 = vmatpush2.msra.mxu0 0.0
        %279 = vmatprep.subr.mxu0 0.0
        %280 = vmatpush2.msra.mxu0 0.0
        %281 = vmatprep.subr.mxu0 0.0
        %282 = vmatpush2.msra.mxu0 0.0
        %283 = vmatprep.subr.mxu0 0.0
        %284 = vmatpush2.msra.mxu0 0.0
        %285 = vmatprep.subr.mxu0 0.0
        %286 = vmatpush2.msra.mxu0 0.0
        %287 = vmatprep.subr.mxu0 0.0
        %288 = vmatpush2.msra.mxu0 0.0
        %289 = vmatprep.mubr.f32.mxu0 0.0
        %290 = vmatmul.mubr.f32.gmra.mxu0 %v210
        %v291 = vpop.f32.mrf.mxu0
        %v292 = vadd.f32 %v191, %v291
        %v293 = vpop.f32.mrf.mxu0
        %294 = vmatprep.mubr.f32.mxu0 0.0
        %295 = vmatmul.mubr.f32.gmra.mxu0 %v213
        %v296 = vpop.f32.mrf.mxu0
        %v297 = vadd.f32 %v196, %v296
        %v298 = vpop.f32.mrf.mxu0
        %299 = vmatprep.mubr.f32.mxu0 0.0
        %300 = vmatmul.mubr.f32.gmra.mxu0 %v216
        %v301 = vpop.f32.mrf.mxu0
        %v302 = vadd.f32 %v201, %v301
        %v303 = vpop.f32.mrf.mxu0
        %304 = vmatprep.mubr.f32.mxu0 0.0
        %305 = vmatmul.mubr.f32.gmra.mxu0 %v219
        %v306 = vpop.f32.mrf.mxu0
        %v307 = vadd.f32 %v206, %v306
        %v308 = vpop.f32.mrf.mxu0
        %309 = vdwg.mxu0
        %s310 = scalar_lea.vmem [#allocation4], 32
        %v311 = vld [vmem:[%s310] sm:$0xff]
        %v312 = vld [vmem:[%s310 + $0x8] sm:$0xff]
        %v313 = vld [vmem:[%s310 + $0x10] sm:$0xff]
        %v314 = vld [vmem:[%s310 + $0x18] sm:$0xff]
        %s315 = scalar_lea.vmem [#allocation4], 64
        %v316 = vld [vmem:[%s315] sm:$0xff]
        %v317 = vld [vmem:[%s315 + $0x8] sm:$0xff]
        %v318 = vld [vmem:[%s315 + $0x10] sm:$0xff]
        %v319 = vld [vmem:[%s315 + $0x18] sm:$0xff]
        %324 = vrot.lane.b32.xlu0 %v292, 127
        %v325 = vpop.permute.xlu0 %324
        %326 = vrot.lane.b32.xlu0 %v297, 127
        %v327 = vpop.permute.xlu0 %326
        %328 = vrot.lane.b32.xlu0 %v302, 127
        %v329 = vpop.permute.xlu0 %328
        %330 = vrot.lane.b32.xlu0 %v307, 127
        %v331 = vpop.permute.xlu0 %330
        %vm336 = vcmask 121856
        %v337 = vsel %vm336, %v325, 0.0
        %v338 = vsel %vm336, %v327, 0.0
        %v339 = vsel %vm336, %v329, 0.0
        %v340 = vsel %vm336, %v331, 0.0
        %vm341 = vcmask 261120
        %v343 = vsel %vm341, %v316, 0
        %v346 = vsel %vm341, %v317, 0
        %v349 = vsel %vm341, %v318, 0
        %v352 = vsel %vm341, %v319, 0
        %354 = vmatprep.subr.mxu0 0.0
        %355 = vmatpush1.msra.mxu0 0.0
        %356 = vmatprep.subr.mxu0 0.0
        %357 = vmatpush1.msra.mxu0 0.0
        %358 = vmatprep.subr.mxu0 0.0
        %359 = vmatpush1.msra.mxu0 0.0
        %360 = vmatprep.subr.mxu0 0.0
        %361 = vmatpush1.msra.mxu0 0.0
        %362 = vmatprep.subr.mxu0 0.0
        %363 = vmatpush1.msra.mxu0 0.0
        %364 = vmatprep.subr.mxu0 0.0
        %365 = vmatpush1.msra.mxu0 0.0
        %366 = vmatprep.subr.mxu0 0.0
        %367 = vmatpush1.msra.mxu0 0.0
        %368 = vmatprep.subr.mxu0 0.0
        %369 = vmatpush1.msra.mxu0 0.0
        %370 = vmatprep.subr.mxu0 0.0
        %371 = vmatpush1.msra.mxu0 0.0
        %372 = vmatprep.subr.mxu0 0.0
        %373 = vmatpush1.msra.mxu0 0.0
        %374 = vmatprep.subr.mxu0 0.0
        %375 = vmatpush1.msra.mxu0 0.0
        %376 = vmatprep.subr.mxu0 0.0
        %377 = vmatpush1.msra.mxu0 0.0
        %378 = vmatprep.subr.mxu0 0.0
        %379 = vmatpush1.msra.mxu0 %v340
        %380 = vmatprep.subr.mxu0 0.0
        %381 = vmatpush1.msra.mxu0 %v339
        %382 = vmatprep.subr.mxu0 0.0
        %383 = vmatpush1.msra.mxu0 %v338
        %384 = vmatprep.subr.mxu0 0.0
        %385 = vmatpush1.msra.mxu0 %v337
        %386 = vmatprep.subr.mxu0 0.0
        %387 = vmatpush2.msra.mxu0 0.0
        %388 = vmatprep.subr.mxu0 0.0
        %389 = vmatpush2.msra.mxu0 0.0
        %390 = vmatprep.subr.mxu0 0.0
        %391 = vmatpush2.msra.mxu0 0.0
        %392 = vmatprep.subr.mxu0 0.0
        %393 = vmatpush2.msra.mxu0 0.0
        %394 = vmatprep.subr.mxu0 0.0
        %395 = vmatpush2.msra.mxu0 0.0
        %396 = vmatprep.subr.mxu0 0.0
        %397 = vmatpush2.msra.mxu0 0.0
        %398 = vmatprep.subr.mxu0 0.0
        %399 = vmatpush2.msra.mxu0 0.0
        %400 = vmatprep.subr.mxu0 0.0
        %401 = vmatpush2.msra.mxu0 0.0
        %402 = vmatprep.subr.mxu0 0.0
        %403 = vmatpush2.msra.mxu0 0.0
        %404 = vmatprep.subr.mxu0 0.0
        %405 = vmatpush2.msra.mxu0 0.0
        %406 = vmatprep.subr.mxu0 0.0
        %407 = vmatpush2.msra.mxu0 0.0
        %408 = vmatprep.subr.mxu0 0.0
        %409 = vmatpush2.msra.mxu0 0.0
        %410 = vmatprep.subr.mxu0 0.0
        %411 = vmatpush2.msra.mxu0 0.0
        %412 = vmatprep.subr.mxu0 0.0
        %413 = vmatpush2.msra.mxu0 0.0
        %414 = vmatprep.subr.mxu0 0.0
        %415 = vmatpush2.msra.mxu0 0.0
        %416 = vmatprep.subr.mxu0 0.0
        %417 = vmatpush2.msra.mxu0 0.0
        %418 = vmatprep.mubr.f32.mxu0 0.0
        %419 = vmatmul.mubr.f32.gmra.mxu0 %v343
        %v420 = vpop.f32.mrf.mxu0
        %v421 = vadd.f32 0.0, %v420
        %v422 = vpop.f32.mrf.mxu0
        %423 = vmatprep.mubr.f32.mxu0 0.0
        %424 = vmatmul.mubr.f32.gmra.mxu0 %v346
        %v425 = vpop.f32.mrf.mxu0
        %v426 = vadd.f32 0.0, %v425
        %v427 = vpop.f32.mrf.mxu0
        %428 = vmatprep.mubr.f32.mxu0 0.0
        %429 = vmatmul.mubr.f32.gmra.mxu0 %v349
        %v430 = vpop.f32.mrf.mxu0
        %v431 = vadd.f32 0.0, %v430
        %v432 = vpop.f32.mrf.mxu0
        %433 = vmatprep.mubr.f32.mxu0 0.0
        %434 = vmatmul.mubr.f32.gmra.mxu0 %v352
        %v435 = vpop.f32.mrf.mxu0
        %v436 = vadd.f32 0.0, %v435
        %v437 = vpop.f32.mrf.mxu0
        %438 = vdwg.mxu0
        %v440 = vsel %vm341, %v311, 0
        %v443 = vsel %vm341, %v312, 0
        %v446 = vsel %vm341, %v313, 0
        %v449 = vsel %vm341, %v314, 0
        %451 = vmatprep.subr.mxu0 0.0
        %452 = vmatpush1.msra.mxu0 0.0
        %453 = vmatprep.subr.mxu0 0.0
        %454 = vmatpush1.msra.mxu0 0.0
        %455 = vmatprep.subr.mxu0 0.0
        %456 = vmatpush1.msra.mxu0 0.0
        %457 = vmatprep.subr.mxu0 0.0
        %458 = vmatpush1.msra.mxu0 0.0
        %459 = vmatprep.subr.mxu0 0.0
        %460 = vmatpush1.msra.mxu0 0.0
        %461 = vmatprep.subr.mxu0 0.0
        %462 = vmatpush1.msra.mxu0 0.0
        %463 = vmatprep.subr.mxu0 0.0
        %464 = vmatpush1.msra.mxu0 0.0
        %465 = vmatprep.subr.mxu0 0.0
        %466 = vmatpush1.msra.mxu0 0.0
        %467 = vmatprep.subr.mxu0 0.0
        %468 = vmatpush1.msra.mxu0 0.0
        %469 = vmatprep.subr.mxu0 0.0
        %470 = vmatpush1.msra.mxu0 0.0
        %471 = vmatprep.subr.mxu0 0.0
        %472 = vmatpush1.msra.mxu0 0.0
        %473 = vmatprep.subr.mxu0 0.0
        %474 = vmatpush1.msra.mxu0 0.0
        %475 = vmatprep.subr.mxu0 0.0
        %476 = vmatpush1.msra.mxu0 %v307
        %477 = vmatprep.subr.mxu0 0.0
        %478 = vmatpush1.msra.mxu0 %v302
        %479 = vmatprep.subr.mxu0 0.0
        %480 = vmatpush1.msra.mxu0 %v297
        %481 = vmatprep.subr.mxu0 0.0
        %482 = vmatpush1.msra.mxu0 %v292
        %483 = vmatprep.subr.mxu0 0.0
        %484 = vmatpush2.msra.mxu0 0.0
        %485 = vmatprep.subr.mxu0 0.0
        %486 = vmatpush2.msra.mxu0 0.0
        %487 = vmatprep.subr.mxu0 0.0
        %488 = vmatpush2.msra.mxu0 0.0
        %489 = vmatprep.subr.mxu0 0.0
        %490 = vmatpush2.msra.mxu0 0.0
        %491 = vmatprep.subr.mxu0 0.0
        %492 = vmatpush2.msra.mxu0 0.0
        %493 = vmatprep.subr.mxu0 0.0
        %494 = vmatpush2.msra.mxu0 0.0
        %495 = vmatprep.subr.mxu0 0.0
        %496 = vmatpush2.msra.mxu0 0.0
        %497 = vmatprep.subr.mxu0 0.0
        %498 = vmatpush2.msra.mxu0 0.0
        %499 = vmatprep.subr.mxu0 0.0
        %500 = vmatpush2.msra.mxu0 0.0
        %501 = vmatprep.subr.mxu0 0.0
        %502 = vmatpush2.msra.mxu0 0.0
        %503 = vmatprep.subr.mxu0 0.0
        %504 = vmatpush2.msra.mxu0 0.0
        %505 = vmatprep.subr.mxu0 0.0
        %506 = vmatpush2.msra.mxu0 0.0
        %507 = vmatprep.subr.mxu0 0.0
        %508 = vmatpush2.msra.mxu0 0.0
        %509 = vmatprep.subr.mxu0 0.0
        %510 = vmatpush2.msra.mxu0 0.0
        %511 = vmatprep.subr.mxu0 0.0
        %512 = vmatpush2.msra.mxu0 0.0
        %513 = vmatprep.subr.mxu0 0.0
        %514 = vmatpush2.msra.mxu0 0.0
        %515 = vmatprep.mubr.f32.mxu0 0.0
        %516 = vmatmul.mubr.f32.gmra.mxu0 %v440
        %v517 = vpop.f32.mrf.mxu0
        %v518 = vadd.f32 %v421, %v517
        %v519 = vpop.f32.mrf.mxu0
        %520 = vmatprep.mubr.f32.mxu0 0.0
        %521 = vmatmul.mubr.f32.gmra.mxu0 %v443
        %v522 = vpop.f32.mrf.mxu0
        %v523 = vadd.f32 %v426, %v522
        %v524 = vpop.f32.mrf.mxu0
        %525 = vmatprep.mubr.f32.mxu0 0.0
        %526 = vmatmul.mubr.f32.gmra.mxu0 %v446
        %v527 = vpop.f32.mrf.mxu0
        %v528 = vadd.f32 %v431, %v527
        %v529 = vpop.f32.mrf.mxu0
        %530 = vmatprep.mubr.f32.mxu0 0.0
        %531 = vmatmul.mubr.f32.gmra.mxu0 %v449
        %v532 = vpop.f32.mrf.mxu0
        %v533 = vadd.f32 %v436, %v532
        %v534 = vpop.f32.mrf.mxu0
        %535 = vdwg.mxu0
        %536 = vset.pattern.permute.xlu0 1
        %537 = vperm.xlu0 %536, %v178
        %v538 = vpop.permute.xlu0 %537
        %540 = vset.pattern.permute.xlu0 1
        %541 = vperm.xlu0 %540, %v179
        %v542 = vpop.permute.xlu0 %541
        %544 = vset.pattern.permute.xlu0 1
        %545 = vperm.xlu0 %544, %v180
        %v546 = vpop.permute.xlu0 %545
        %548 = vset.pattern.permute.xlu0 1
        %549 = vperm.xlu0 %548, %v181
        %v550 = vpop.permute.xlu0 %549
        %v552 = vadd.f32 %v518, %v538
        %v553 = vadd.f32 %v523, %v542
        %v554 = vadd.f32 %v528, %v546
        %v555 = vadd.f32 %v533, %v550
        %s556 = scalar_lea.vmem [#allocation4], 96
        %v557 = vld [vmem:[%s556] sm:$0xff]
        %v558 = vld [vmem:[%s556 + $0x8] sm:$0xff]
        %v559 = vld [vmem:[%s556 + $0x10] sm:$0xff]
        %v560 = vld [vmem:[%s556 + $0x18] sm:$0xff]
        %561 = vset.pattern.permute.xlu0 2
        %562 = vperm.xlu0 %561, %v178
        %v563 = vpop.permute.xlu0 %562
        %565 = vset.pattern.permute.xlu0 2
        %566 = vperm.xlu0 %565, %v179
        %v567 = vpop.permute.xlu0 %566
        %569 = vset.pattern.permute.xlu0 2
        %570 = vperm.xlu0 %569, %v180
        %v571 = vpop.permute.xlu0 %570
        %573 = vset.pattern.permute.xlu0 2
        %574 = vperm.xlu0 %573, %v181
        %v575 = vpop.permute.xlu0 %574
        %v578 = vsel %vm341, %v557, 0
        %v581 = vsel %vm341, %v558, 0
        %v584 = vsel %vm341, %v559, 0
        %v587 = vsel %vm341, %v560, 0
        %589 = vmatprep.subr.mxu0 0.0
        %590 = vmatpush1.msra.mxu0 0.0
        %591 = vmatprep.subr.mxu0 0.0
        %592 = vmatpush1.msra.mxu0 0.0
        %593 = vmatprep.subr.mxu0 0.0
        %594 = vmatpush1.msra.mxu0 0.0
        %595 = vmatprep.subr.mxu0 0.0
        %596 = vmatpush1.msra.mxu0 0.0
        %597 = vmatprep.subr.mxu0 0.0
        %598 = vmatpush1.msra.mxu0 0.0
        %599 = vmatprep.subr.mxu0 0.0
        %600 = vmatpush1.msra.mxu0 0.0
        %601 = vmatprep.subr.mxu0 0.0
        %602 = vmatpush1.msra.mxu0 0.0
        %603 = vmatprep.subr.mxu0 0.0
        %604 = vmatpush1.msra.mxu0 0.0
        %605 = vmatprep.subr.mxu0 0.0
        %606 = vmatpush1.msra.mxu0 0.0
        %607 = vmatprep.subr.mxu0 0.0
        %608 = vmatpush1.msra.mxu0 0.0
        %609 = vmatprep.subr.mxu0 0.0
        %610 = vmatpush1.msra.mxu0 0.0
        %611 = vmatprep.subr.mxu0 0.0
        %612 = vmatpush1.msra.mxu0 0.0
        %613 = vmatprep.subr.mxu0 0.0
        %614 = vmatpush1.msra.mxu0 %v555
        %615 = vmatprep.subr.mxu0 0.0
        %616 = vmatpush1.msra.mxu0 %v554
        %617 = vmatprep.subr.mxu0 0.0
        %618 = vmatpush1.msra.mxu0 %v553
        %619 = vmatprep.subr.mxu0 0.0
        %620 = vmatpush1.msra.mxu0 %v552
        %621 = vmatprep.subr.mxu0 0.0
        %622 = vmatpush2.msra.mxu0 0.0
        %623 = vmatprep.subr.mxu0 0.0
        %624 = vmatpush2.msra.mxu0 0.0
        %625 = vmatprep.subr.mxu0 0.0
        %626 = vmatpush2.msra.mxu0 0.0
        %627 = vmatprep.subr.mxu0 0.0
        %628 = vmatpush2.msra.mxu0 0.0
        %629 = vmatprep.subr.mxu0 0.0
        %630 = vmatpush2.msra.mxu0 0.0
        %631 = vmatprep.subr.mxu0 0.0
        %632 = vmatpush2.msra.mxu0 0.0
        %633 = vmatprep.subr.mxu0 0.0
        %634 = vmatpush2.msra.mxu0 0.0
        %635 = vmatprep.subr.mxu0 0.0
        %636 = vmatpush2.msra.mxu0 0.0
        %637 = vmatprep.subr.mxu0 0.0
        %638 = vmatpush2.msra.mxu0 0.0
        %639 = vmatprep.subr.mxu0 0.0
        %640 = vmatpush2.msra.mxu0 0.0
        %641 = vmatprep.subr.mxu0 0.0
        %642 = vmatpush2.msra.mxu0 0.0
        %643 = vmatprep.subr.mxu0 0.0
        %644 = vmatpush2.msra.mxu0 0.0
        %645 = vmatprep.subr.mxu0 0.0
        %646 = vmatpush2.msra.mxu0 0.0
        %647 = vmatprep.subr.mxu0 0.0
        %648 = vmatpush2.msra.mxu0 0.0
        %649 = vmatprep.subr.mxu0 0.0
        %650 = vmatpush2.msra.mxu0 0.0
        %651 = vmatprep.subr.mxu0 0.0
        %652 = vmatpush2.msra.mxu0 0.0
        %653 = vmatprep.mubr.f32.mxu0 0.0
        %654 = vmatmul.mubr.f32.gmra.mxu0 %v578
        %v655 = vpop.f32.mrf.mxu0
        %v656 = vadd.f32 %v563, %v655
        %v657 = vpop.f32.mrf.mxu0
        %658 = vmatprep.mubr.f32.mxu0 0.0
        %659 = vmatmul.mubr.f32.gmra.mxu0 %v581
        %v660 = vpop.f32.mrf.mxu0
        %v661 = vadd.f32 %v567, %v660
        %v662 = vpop.f32.mrf.mxu0
        %663 = vmatprep.mubr.f32.mxu0 0.0
        %664 = vmatmul.mubr.f32.gmra.mxu0 %v584
        %v665 = vpop.f32.mrf.mxu0
        %v666 = vadd.f32 %v571, %v665
        %v667 = vpop.f32.mrf.mxu0
        %668 = vmatprep.mubr.f32.mxu0 0.0
        %669 = vmatmul.mubr.f32.gmra.mxu0 %v587
        %v670 = vpop.f32.mrf.mxu0
        %v671 = vadd.f32 %v575, %v670
        %v672 = vpop.f32.mrf.mxu0
        %673 = vdwg.mxu0
        %s674 = scalar_lea.vmem [#allocation4], 128
        %v675 = vld [vmem:[%s674] sm:$0xff]
        %v676 = vld [vmem:[%s674 + $0x8] sm:$0xff]
        %v677 = vld [vmem:[%s674 + $0x10] sm:$0xff]
        %v678 = vld [vmem:[%s674 + $0x18] sm:$0xff]
        %s679 = scalar_lea.vmem [#allocation4], 160
        %v680 = vld [vmem:[%s679] sm:$0xff]
        %v681 = vld [vmem:[%s679 + $0x8] sm:$0xff]
        %v682 = vld [vmem:[%s679 + $0x10] sm:$0xff]
        %v683 = vld [vmem:[%s679 + $0x18] sm:$0xff]
        %688 = vrot.lane.b32.xlu0 %v656, 126
        %v689 = vpop.permute.xlu0 %688
        %690 = vrot.lane.b32.xlu0 %v661, 126
        %v691 = vpop.permute.xlu0 %690
        %692 = vrot.lane.b32.xlu0 %v666, 126
        %v693 = vpop.permute.xlu0 %692
        %694 = vrot.lane.b32.xlu0 %v671, 126
        %v695 = vpop.permute.xlu0 %694
        %vm700 = vcmask 113664
        %v701 = vsel %vm700, %v689, 0.0
        %v702 = vsel %vm700, %v691, 0.0
        %v703 = vsel %vm700, %v693, 0.0
        %v704 = vsel %vm700, %v695, 0.0
        %v706 = vsel %vm341, %v680, 0
        %v709 = vsel %vm341, %v681, 0
        %v712 = vsel %vm341, %v682, 0
        %v715 = vsel %vm341, %v683, 0
        %717 = vmatprep.subr.mxu0 0.0
        %718 = vmatpush1.msra.mxu0 0.0
        %719 = vmatprep.subr.mxu0 0.0
        %720 = vmatpush1.msra.mxu0 0.0
        %721 = vmatprep.subr.mxu0 0.0
        %722 = vmatpush1.msra.mxu0 0.0
        %723 = vmatprep.subr.mxu0 0.0
        %724 = vmatpush1.msra.mxu0 0.0
        %725 = vmatprep.subr.mxu0 0.0
        %726 = vmatpush1.msra.mxu0 0.0
        %727 = vmatprep.subr.mxu0 0.0
        %728 = vmatpush1.msra.mxu0 0.0
        %729 = vmatprep.subr.mxu0 0.0
        %730 = vmatpush1.msra.mxu0 0.0
        %731 = vmatprep.subr.mxu0 0.0
        %732 = vmatpush1.msra.mxu0 0.0
        %733 = vmatprep.subr.mxu0 0.0
        %734 = vmatpush1.msra.mxu0 0.0
        %735 = vmatprep.subr.mxu0 0.0
        %736 = vmatpush1.msra.mxu0 0.0
        %737 = vmatprep.subr.mxu0 0.0
        %738 = vmatpush1.msra.mxu0 0.0
        %739 = vmatprep.subr.mxu0 0.0
        %740 = vmatpush1.msra.mxu0 0.0
        %741 = vmatprep.subr.mxu0 0.0
        %742 = vmatpush1.msra.mxu0 %v704
        %743 = vmatprep.subr.mxu0 0.0
        %744 = vmatpush1.msra.mxu0 %v703
        %745 = vmatprep.subr.mxu0 0.0
        %746 = vmatpush1.msra.mxu0 %v702
        %747 = vmatprep.subr.mxu0 0.0
        %748 = vmatpush1.msra.mxu0 %v701
        %749 = vmatprep.subr.mxu0 0.0
        %750 = vmatpush2.msra.mxu0 0.0
        %751 = vmatprep.subr.mxu0 0.0
        %752 = vmatpush2.msra.mxu0 0.0
        %753 = vmatprep.subr.mxu0 0.0
        %754 = vmatpush2.msra.mxu0 0.0
        %755 = vmatprep.subr.mxu0 0.0
        %756 = vmatpush2.msra.mxu0 0.0
        %757 = vmatprep.subr.mxu0 0.0
        %758 = vmatpush2.msra.mxu0 0.0
        %759 = vmatprep.subr.mxu0 0.0
        %760 = vmatpush2.msra.mxu0 0.0
        %761 = vmatprep.subr.mxu0 0.0
        %762 = vmatpush2.msra.mxu0 0.0
        %763 = vmatprep.subr.mxu0 0.0
        %764 = vmatpush2.msra.mxu0 0.0
        %765 = vmatprep.subr.mxu0 0.0
        %766 = vmatpush2.msra.mxu0 0.0
        %767 = vmatprep.subr.mxu0 0.0
        %768 = vmatpush2.msra.mxu0 0.0
        %769 = vmatprep.subr.mxu0 0.0
        %770 = vmatpush2.msra.mxu0 0.0
        %771 = vmatprep.subr.mxu0 0.0
        %772 = vmatpush2.msra.mxu0 0.0
        %773 = vmatprep.subr.mxu0 0.0
        %774 = vmatpush2.msra.mxu0 0.0
        %775 = vmatprep.subr.mxu0 0.0
        %776 = vmatpush2.msra.mxu0 0.0
        %777 = vmatprep.subr.mxu0 0.0
        %778 = vmatpush2.msra.mxu0 0.0
        %779 = vmatprep.subr.mxu0 0.0
        %780 = vmatpush2.msra.mxu0 0.0
        %781 = vmatprep.mubr.f32.mxu0 0.0
        %782 = vmatmul.mubr.f32.gmra.mxu0 %v706
        %v783 = vpop.f32.mrf.mxu0
        %v784 = vadd.f32 0.0, %v783
        %v785 = vpop.f32.mrf.mxu0
        %786 = vmatprep.mubr.f32.mxu0 0.0
        %787 = vmatmul.mubr.f32.gmra.mxu0 %v709
        %v788 = vpop.f32.mrf.mxu0
        %v789 = vadd.f32 0.0, %v788
        %v790 = vpop.f32.mrf.mxu0
        %791 = vmatprep.mubr.f32.mxu0 0.0
        %792 = vmatmul.mubr.f32.gmra.mxu0 %v712
        %v793 = vpop.f32.mrf.mxu0
        %v794 = vadd.f32 0.0, %v793
        %v795 = vpop.f32.mrf.mxu0
        %796 = vmatprep.mubr.f32.mxu0 0.0
        %797 = vmatmul.mubr.f32.gmra.mxu0 %v715
        %v798 = vpop.f32.mrf.mxu0
        %v799 = vadd.f32 0.0, %v798
        %v800 = vpop.f32.mrf.mxu0
        %801 = vdwg.mxu0
        %v803 = vsel %vm341, %v675, 0
        %v806 = vsel %vm341, %v676, 0
        %v809 = vsel %vm341, %v677, 0
        %v812 = vsel %vm341, %v678, 0
        %814 = vmatprep.subr.mxu0 0.0
        %815 = vmatpush1.msra.mxu0 0.0
        %816 = vmatprep.subr.mxu0 0.0
        %817 = vmatpush1.msra.mxu0 0.0
        %818 = vmatprep.subr.mxu0 0.0
        %819 = vmatpush1.msra.mxu0 0.0
        %820 = vmatprep.subr.mxu0 0.0
        %821 = vmatpush1.msra.mxu0 0.0
        %822 = vmatprep.subr.mxu0 0.0
        %823 = vmatpush1.msra.mxu0 0.0
        %824 = vmatprep.subr.mxu0 0.0
        %825 = vmatpush1.msra.mxu0 0.0
        %826 = vmatprep.subr.mxu0 0.0
        %827 = vmatpush1.msra.mxu0 0.0
        %828 = vmatprep.subr.mxu0 0.0
        %829 = vmatpush1.msra.mxu0 0.0
        %830 = vmatprep.subr.mxu0 0.0
        %831 = vmatpush1.msra.mxu0 0.0
        %832 = vmatprep.subr.mxu0 0.0
        %833 = vmatpush1.msra.mxu0 0.0
        %834 = vmatprep.subr.mxu0 0.0
        %835 = vmatpush1.msra.mxu0 0.0
        %836 = vmatprep.subr.mxu0 0.0
        %837 = vmatpush1.msra.mxu0 0.0
        %838 = vmatprep.subr.mxu0 0.0
        %839 = vmatpush1.msra.mxu0 %v671
        %840 = vmatprep.subr.mxu0 0.0
        %841 = vmatpush1.msra.mxu0 %v666
        %842 = vmatprep.subr.mxu0 0.0
        %843 = vmatpush1.msra.mxu0 %v661
        %844 = vmatprep.subr.mxu0 0.0
        %845 = vmatpush1.msra.mxu0 %v656
        %846 = vmatprep.subr.mxu0 0.0
        %847 = vmatpush2.msra.mxu0 0.0
        %848 = vmatprep.subr.mxu0 0.0
        %849 = vmatpush2.msra.mxu0 0.0
        %850 = vmatprep.subr.mxu0 0.0
        %851 = vmatpush2.msra.mxu0 0.0
        %852 = vmatprep.subr.mxu0 0.0
        %853 = vmatpush2.msra.mxu0 0.0
        %854 = vmatprep.subr.mxu0 0.0
        %855 = vmatpush2.msra.mxu0 0.0
        %856 = vmatprep.subr.mxu0 0.0
        %857 = vmatpush2.msra.mxu0 0.0
        %858 = vmatprep.subr.mxu0 0.0
        %859 = vmatpush2.msra.mxu0 0.0
        %860 = vmatprep.subr.mxu0 0.0
        %861 = vmatpush2.msra.mxu0 0.0
        %862 = vmatprep.subr.mxu0 0.0
        %863 = vmatpush2.msra.mxu0 0.0
        %864 = vmatprep.subr.mxu0 0.0
        %865 = vmatpush2.msra.mxu0 0.0
        %866 = vmatprep.subr.mxu0 0.0
        %867 = vmatpush2.msra.mxu0 0.0
        %868 = vmatprep.subr.mxu0 0.0
        %869 = vmatpush2.msra.mxu0 0.0
        %870 = vmatprep.subr.mxu0 0.0
        %871 = vmatpush2.msra.mxu0 0.0
        %872 = vmatprep.subr.mxu0 0.0
        %873 = vmatpush2.msra.mxu0 0.0
        %874 = vmatprep.subr.mxu0 0.0
        %875 = vmatpush2.msra.mxu0 0.0
        %876 = vmatprep.subr.mxu0 0.0
        %877 = vmatpush2.msra.mxu0 0.0
        %878 = vmatprep.mubr.f32.mxu0 0.0
        %879 = vmatmul.mubr.f32.gmra.mxu0 %v803
        %v880 = vpop.f32.mrf.mxu0
        %v881 = vadd.f32 %v784, %v880
        %v882 = vpop.f32.mrf.mxu0
        %883 = vmatprep.mubr.f32.mxu0 0.0
        %884 = vmatmul.mubr.f32.gmra.mxu0 %v806
        %v885 = vpop.f32.mrf.mxu0
        %v886 = vadd.f32 %v789, %v885
        %v887 = vpop.f32.mrf.mxu0
        %888 = vmatprep.mubr.f32.mxu0 0.0
        %889 = vmatmul.mubr.f32.gmra.mxu0 %v809
        %v890 = vpop.f32.mrf.mxu0
        %v891 = vadd.f32 %v794, %v890
        %v892 = vpop.f32.mrf.mxu0
        %893 = vmatprep.mubr.f32.mxu0 0.0
        %894 = vmatmul.mubr.f32.gmra.mxu0 %v812
        %v895 = vpop.f32.mrf.mxu0
        %v896 = vadd.f32 %v799, %v895
        %v897 = vpop.f32.mrf.mxu0
        %898 = vdwg.mxu0
        %899 = vset.pattern.permute.xlu0 3
        %900 = vperm.xlu0 %899, %v178
        %v901 = vpop.permute.xlu0 %900
        %903 = vset.pattern.permute.xlu0 3
        %904 = vperm.xlu0 %903, %v179
        %v905 = vpop.permute.xlu0 %904
        %907 = vset.pattern.permute.xlu0 3
        %908 = vperm.xlu0 %907, %v180
        %v909 = vpop.permute.xlu0 %908
        %911 = vset.pattern.permute.xlu0 3
        %912 = vperm.xlu0 %911, %v181
        %v913 = vpop.permute.xlu0 %912
        %v915 = vadd.f32 %v881, %v901
        %v916 = vadd.f32 %v886, %v905
        %v917 = vadd.f32 %v891, %v909
        %v918 = vadd.f32 %v896, %v913
        %s919 = scalar_lea.vmem [#allocation4], 192
        %v920 = vld [vmem:[%s919] sm:$0xff]
        %v921 = vld [vmem:[%s919 + $0x8] sm:$0xff]
        %v922 = vld [vmem:[%s919 + $0x10] sm:$0xff]
        %v923 = vld [vmem:[%s919 + $0x18] sm:$0xff]
        %924 = vset.pattern.permute.xlu0 4
        %925 = vperm.xlu0 %924, %v178
        %v926 = vpop.permute.xlu0 %925
        %928 = vset.pattern.permute.xlu0 4
        %929 = vperm.xlu0 %928, %v179
        %v930 = vpop.permute.xlu0 %929
        %932 = vset.pattern.permute.xlu0 4
        %933 = vperm.xlu0 %932, %v180
        %v934 = vpop.permute.xlu0 %933
        %936 = vset.pattern.permute.xlu0 4
        %937 = vperm.xlu0 %936, %v181
        %v938 = vpop.permute.xlu0 %937
        %v941 = vsel %vm341, %v920, 0
        %v944 = vsel %vm341, %v921, 0
        %v947 = vsel %vm341, %v922, 0
        %v950 = vsel %vm341, %v923, 0
        %952 = vmatprep.subr.mxu0 0.0
        %953 = vmatpush1.msra.mxu0 0.0
        %954 = vmatprep.subr.mxu0 0.0
        %955 = vmatpush1.msra.mxu0 0.0
        %956 = vmatprep.subr.mxu0 0.0
        %957 = vmatpush1.msra.mxu0 0.0
        %958 = vmatprep.subr.mxu0 0.0
        %959 = vmatpush1.msra.mxu0 0.0
        %960 = vmatprep.subr.mxu0 0.0
        %961 = vmatpush1.msra.mxu0 0.0
        %962 = vmatprep.subr.mxu0 0.0
        %963 = vmatpush1.msra.mxu0 0.0
        %964 = vmatprep.subr.mxu0 0.0
        %965 = vmatpush1.msra.mxu0 0.0
        %966 = vmatprep.subr.mxu0 0.0
        %967 = vmatpush1.msra.mxu0 0.0
        %968 = vmatprep.subr.mxu0 0.0
        %969 = vmatpush1.msra.mxu0 0.0
        %970 = vmatprep.subr.mxu0 0.0
        %971 = vmatpush1.msra.mxu0 0.0
        %972 = vmatprep.subr.mxu0 0.0
        %973 = vmatpush1.msra.mxu0 0.0
        %974 = vmatprep.subr.mxu0 0.0
        %975 = vmatpush1.msra.mxu0 0.0
        %976 = vmatprep.subr.mxu0 0.0
        %977 = vmatpush1.msra.mxu0 %v918
        %978 = vmatprep.subr.mxu0 0.0
        %979 = vmatpush1.msra.mxu0 %v917
        %980 = vmatprep.subr.mxu0 0.0
        %981 = vmatpush1.msra.mxu0 %v916
        %982 = vmatprep.subr.mxu0 0.0
        %983 = vmatpush1.msra.mxu0 %v915
        %984 = vmatprep.subr.mxu0 0.0
        %985 = vmatpush2.msra.mxu0 0.0
        %986 = vmatprep.subr.mxu0 0.0
        %987 = vmatpush2.msra.mxu0 0.0
        %988 = vmatprep.subr.mxu0 0.0
        %989 = vmatpush2.msra.mxu0 0.0
        %990 = vmatprep.subr.mxu0 0.0
        %991 = vmatpush2.msra.mxu0 0.0
        %992 = vmatprep.subr.mxu0 0.0
        %993 = vmatpush2.msra.mxu0 0.0
        %994 = vmatprep.subr.mxu0 0.0
        %995 = vmatpush2.msra.mxu0 0.0
        %996 = vmatprep.subr.mxu0 0.0
        %997 = vmatpush2.msra.mxu0 0.0
        %998 = vmatprep.subr.mxu0 0.0
        %999 = vmatpush2.msra.mxu0 0.0
        %1000 = vmatprep.subr.mxu0 0.0
        %1001 = vmatpush2.msra.mxu0 0.0
        %1002 = vmatprep.subr.mxu0 0.0
        %1003 = vmatpush2.msra.mxu0 0.0
        %1004 = vmatprep.subr.mxu0 0.0
        %1005 = vmatpush2.msra.mxu0 0.0
        %1006 = vmatprep.subr.mxu0 0.0
        %1007 = vmatpush2.msra.mxu0 0.0
        %1008 = vmatprep.subr.mxu0 0.0
        %1009 = vmatpush2.msra.mxu0 0.0
        %1010 = vmatprep.subr.mxu0 0.0
        %1011 = vmatpush2.msra.mxu0 0.0
        %1012 = vmatprep.subr.mxu0 0.0
        %1013 = vmatpush2.msra.mxu0 0.0
        %1014 = vmatprep.subr.mxu0 0.0
        %1015 = vmatpush2.msra.mxu0 0.0
        %1016 = vmatprep.mubr.f32.mxu0 0.0
        %1017 = vmatmul.mubr.f32.gmra.mxu0 %v941
        %v1018 = vpop.f32.mrf.mxu0
        %v1019 = vadd.f32 %v926, %v1018
        %v1020 = vpop.f32.mrf.mxu0
        %1021 = vmatprep.mubr.f32.mxu0 0.0
        %1022 = vmatmul.mubr.f32.gmra.mxu0 %v944
        %v1023 = vpop.f32.mrf.mxu0
        %v1024 = vadd.f32 %v930, %v1023
        %v1025 = vpop.f32.mrf.mxu0
        %1026 = vmatprep.mubr.f32.mxu0 0.0
        %1027 = vmatmul.mubr.f32.gmra.mxu0 %v947
        %v1028 = vpop.f32.mrf.mxu0
        %v1029 = vadd.f32 %v934, %v1028
        %v1030 = vpop.f32.mrf.mxu0
        %1031 = vmatprep.mubr.f32.mxu0 0.0
        %1032 = vmatmul.mubr.f32.gmra.mxu0 %v950
        %v1033 = vpop.f32.mrf.mxu0
        %v1034 = vadd.f32 %v938, %v1033
        %v1035 = vpop.f32.mrf.mxu0
        %1036 = vdwg.mxu0
        %s1037 = scalar_lea.vmem [#allocation4], 224
        %v1038 = vld [vmem:[%s1037] sm:$0xff]
        %v1039 = vld [vmem:[%s1037 + $0x8] sm:$0xff]
        %v1040 = vld [vmem:[%s1037 + $0x10] sm:$0xff]
        %v1041 = vld [vmem:[%s1037 + $0x18] sm:$0xff]
        %v1043 = vsel %vm341, %v1038, 0
        %v1046 = vsel %vm341, %v1039, 0
        %v1049 = vsel %vm341, %v1040, 0
        %v1052 = vsel %vm341, %v1041, 0
        %1054 = vmatprep.subr.mxu0 0.0
        %1055 = vmatpush1.msra.mxu0 0.0
        %1056 = vmatprep.subr.mxu0 0.0
        %1057 = vmatpush1.msra.mxu0 0.0
        %1058 = vmatprep.subr.mxu0 0.0
        %1059 = vmatpush1.msra.mxu0 0.0
        %1060 = vmatprep.subr.mxu0 0.0
        %1061 = vmatpush1.msra.mxu0 0.0
        %1062 = vmatprep.subr.mxu0 0.0
        %1063 = vmatpush1.msra.mxu0 0.0
        %1064 = vmatprep.subr.mxu0 0.0
        %1065 = vmatpush1.msra.mxu0 0.0
        %1066 = vmatprep.subr.mxu0 0.0
        %1067 = vmatpush1.msra.mxu0 0.0
        %1068 = vmatprep.subr.mxu0 0.0
        %1069 = vmatpush1.msra.mxu0 0.0
        %1070 = vmatprep.subr.mxu0 0.0
        %1071 = vmatpush1.msra.mxu0 0.0
        %1072 = vmatprep.subr.mxu0 0.0
        %1073 = vmatpush1.msra.mxu0 0.0
        %1074 = vmatprep.subr.mxu0 0.0
        %1075 = vmatpush1.msra.mxu0 0.0
        %1076 = vmatprep.subr.mxu0 0.0
        %1077 = vmatpush1.msra.mxu0 0.0
        %1078 = vmatprep.subr.mxu0 0.0
        %1079 = vmatpush1.msra.mxu0 %v1034
        %1080 = vmatprep.subr.mxu0 0.0
        %1081 = vmatpush1.msra.mxu0 %v1029
        %1082 = vmatprep.subr.mxu0 0.0
        %1083 = vmatpush1.msra.mxu0 %v1024
        %1084 = vmatprep.subr.mxu0 0.0
        %1085 = vmatpush1.msra.mxu0 %v1019
        %1086 = vmatprep.subr.mxu0 0.0
        %1087 = vmatpush2.msra.mxu0 0.0
        %1088 = vmatprep.subr.mxu0 0.0
        %1089 = vmatpush2.msra.mxu0 0.0
        %1090 = vmatprep.subr.mxu0 0.0
        %1091 = vmatpush2.msra.mxu0 0.0
        %1092 = vmatprep.subr.mxu0 0.0
        %1093 = vmatpush2.msra.mxu0 0.0
        %1094 = vmatprep.subr.mxu0 0.0
        %1095 = vmatpush2.msra.mxu0 0.0
        %1096 = vmatprep.subr.mxu0 0.0
        %1097 = vmatpush2.msra.mxu0 0.0
        %1098 = vmatprep.subr.mxu0 0.0
        %1099 = vmatpush2.msra.mxu0 0.0
        %1100 = vmatprep.subr.mxu0 0.0
        %1101 = vmatpush2.msra.mxu0 0.0
        %1102 = vmatprep.subr.mxu0 0.0
        %1103 = vmatpush2.msra.mxu0 0.0
        %1104 = vmatprep.subr.mxu0 0.0
        %1105 = vmatpush2.msra.mxu0 0.0
        %1106 = vmatprep.subr.mxu0 0.0
        %1107 = vmatpush2.msra.mxu0 0.0
        %1108 = vmatprep.subr.mxu0 0.0
        %1109 = vmatpush2.msra.mxu0 0.0
        %1110 = vmatprep.subr.mxu0 0.0
        %1111 = vmatpush2.msra.mxu0 0.0
        %1112 = vmatprep.subr.mxu0 0.0
        %1113 = vmatpush2.msra.mxu0 0.0
        %1114 = vmatprep.subr.mxu0 0.0
        %1115 = vmatpush2.msra.mxu0 0.0
        %1116 = vmatprep.subr.mxu0 0.0
        %1117 = vmatpush2.msra.mxu0 0.0
        %1118 = vmatprep.mubr.f32.mxu0 0.0
        %1119 = vmatmul.mubr.f32.gmra.mxu0 %v1043
        %v1120 = vpop.f32.mrf.mxu0
        %v1121 = vadd.f32 0.0, %v1120
        %v1122 = vpop.f32.mrf.mxu0
        %1123 = vmatprep.mubr.f32.mxu0 0.0
        %1124 = vmatmul.mubr.f32.gmra.mxu0 %v1046
        %v1125 = vpop.f32.mrf.mxu0
        %v1126 = vadd.f32 0.0, %v1125
        %v1127 = vpop.f32.mrf.mxu0
        %1128 = vmatprep.mubr.f32.mxu0 0.0
        %1129 = vmatmul.mubr.f32.gmra.mxu0 %v1049
        %v1130 = vpop.f32.mrf.mxu0
        %v1131 = vadd.f32 0.0, %v1130
        %v1132 = vpop.f32.mrf.mxu0
        %1133 = vmatprep.mubr.f32.mxu0 0.0
        %1134 = vmatmul.mubr.f32.gmra.mxu0 %v1052
        %v1135 = vpop.f32.mrf.mxu0
        %v1136 = vadd.f32 0.0, %v1135
        %v1137 = vpop.f32.mrf.mxu0
        %1138 = vdwg.mxu0
        %s1139 = scalar_lea.vmem [#allocation4], 256
        %v1140 = vld [vmem:[%s1139] sm:$0xff]
        %v1141 = vld [vmem:[%s1139 + $0x8] sm:$0xff]
        %v1142 = vld [vmem:[%s1139 + $0x10] sm:$0xff]
        %v1143 = vld [vmem:[%s1139 + $0x18] sm:$0xff]
        %v1145 = vsel %vm341, %v1140, 0
        %v1148 = vsel %vm341, %v1141, 0
        %v1151 = vsel %vm341, %v1142, 0
        %v1154 = vsel %vm341, %v1143, 0
        %1156 = vmatprep.subr.mxu0 0.0
        %1157 = vmatpush1.msra.mxu0 0.0
        %1158 = vmatprep.subr.mxu0 0.0
        %1159 = vmatpush1.msra.mxu0 0.0
        %1160 = vmatprep.subr.mxu0 0.0
        %1161 = vmatpush1.msra.mxu0 0.0
        %1162 = vmatprep.subr.mxu0 0.0
        %1163 = vmatpush1.msra.mxu0 0.0
        %1164 = vmatprep.subr.mxu0 0.0
        %1165 = vmatpush1.msra.mxu0 0.0
        %1166 = vmatprep.subr.mxu0 0.0
        %1167 = vmatpush1.msra.mxu0 0.0
        %1168 = vmatprep.subr.mxu0 0.0
        %1169 = vmatpush1.msra.mxu0 0.0
        %1170 = vmatprep.subr.mxu0 0.0
        %1171 = vmatpush1.msra.mxu0 0.0
        %1172 = vmatprep.subr.mxu0 0.0
        %1173 = vmatpush1.msra.mxu0 0.0
        %1174 = vmatprep.subr.mxu0 0.0
        %1175 = vmatpush1.msra.mxu0 0.0
        %1176 = vmatprep.subr.mxu0 0.0
        %1177 = vmatpush1.msra.mxu0 0.0
        %1178 = vmatprep.subr.mxu0 0.0
        %1179 = vmatpush1.msra.mxu0 0.0
        %1180 = vmatprep.subr.mxu0 0.0
        %1181 = vmatpush1.msra.mxu0 %v1034
        %1182 = vmatprep.subr.mxu0 0.0
        %1183 = vmatpush1.msra.mxu0 %v1029
        %1184 = vmatprep.subr.mxu0 0.0
        %1185 = vmatpush1.msra.mxu0 %v1024
        %1186 = vmatprep.subr.mxu0 0.0
        %1187 = vmatpush1.msra.mxu0 %v1019
        %1188 = vmatprep.subr.mxu0 0.0
        %1189 = vmatpush2.msra.mxu0 0.0
        %1190 = vmatprep.subr.mxu0 0.0
        %1191 = vmatpush2.msra.mxu0 0.0
        %1192 = vmatprep.subr.mxu0 0.0
        %1193 = vmatpush2.msra.mxu0 0.0
        %1194 = vmatprep.subr.mxu0 0.0
        %1195 = vmatpush2.msra.mxu0 0.0
        %1196 = vmatprep.subr.mxu0 0.0
        %1197 = vmatpush2.msra.mxu0 0.0
        %1198 = vmatprep.subr.mxu0 0.0
        %1199 = vmatpush2.msra.mxu0 0.0
        %1200 = vmatprep.subr.mxu0 0.0
        %1201 = vmatpush2.msra.mxu0 0.0
        %1202 = vmatprep.subr.mxu0 0.0
        %1203 = vmatpush2.msra.mxu0 0.0
        %1204 = vmatprep.subr.mxu0 0.0
        %1205 = vmatpush2.msra.mxu0 0.0
        %1206 = vmatprep.subr.mxu0 0.0
        %1207 = vmatpush2.msra.mxu0 0.0
        %1208 = vmatprep.subr.mxu0 0.0
        %1209 = vmatpush2.msra.mxu0 0.0
        %1210 = vmatprep.subr.mxu0 0.0
        %1211 = vmatpush2.msra.mxu0 0.0
        %1212 = vmatprep.subr.mxu0 0.0
        %1213 = vmatpush2.msra.mxu0 0.0
        %1214 = vmatprep.subr.mxu0 0.0
        %1215 = vmatpush2.msra.mxu0 0.0
        %1216 = vmatprep.subr.mxu0 0.0
        %1217 = vmatpush2.msra.mxu0 0.0
        %1218 = vmatprep.subr.mxu0 0.0
        %1219 = vmatpush2.msra.mxu0 0.0
        %1220 = vmatprep.mubr.f32.mxu0 0.0
        %1221 = vmatmul.mubr.f32.gmra.mxu0 %v1145
        %v1222 = vpop.f32.mrf.mxu0
        %v1223 = vadd.f32 0.0, %v1222
        %v1224 = vpop.f32.mrf.mxu0
        %1225 = vmatprep.mubr.f32.mxu0 0.0
        %1226 = vmatmul.mubr.f32.gmra.mxu0 %v1148
        %v1227 = vpop.f32.mrf.mxu0
        %v1228 = vadd.f32 0.0, %v1227
        %v1229 = vpop.f32.mrf.mxu0
        %1230 = vmatprep.mubr.f32.mxu0 0.0
        %1231 = vmatmul.mubr.f32.gmra.mxu0 %v1151
        %v1232 = vpop.f32.mrf.mxu0
        %v1233 = vadd.f32 0.0, %v1232
        %v1234 = vpop.f32.mrf.mxu0
        %1235 = vmatprep.mubr.f32.mxu0 0.0
        %1236 = vmatmul.mubr.f32.gmra.mxu0 %v1154
        %v1237 = vpop.f32.mrf.mxu0
        %v1238 = vadd.f32 0.0, %v1237
        %v1239 = vpop.f32.mrf.mxu0
        %1240 = vdwg.mxu0
        %v1241 = vand.u32 %v183, 3
        %vm1242 = vcmp.eq.s32.totalorder %v1241, 0
        %1247 = vrot.lane.b32.xlu0 %v1223, 2
        %v1248 = vpop.permute.xlu0 %1247
        %1249 = vrot.lane.b32.xlu0 %v1228, 2
        %v1250 = vpop.permute.xlu0 %1249
        %1251 = vrot.lane.b32.xlu0 %v1233, 2
        %v1252 = vpop.permute.xlu0 %1251
        %1253 = vrot.lane.b32.xlu0 %v1238, 2
        %v1254 = vpop.permute.xlu0 %1253
        %vm1259 = vcmask 15360
        %v1260 = vsel %vm1259, 0.0, %v1248
        %v1261 = vsel %vm1259, 0.0, %v1250
        %v1262 = vsel %vm1259, 0.0, %v1252
        %v1263 = vsel %vm1259, 0.0, %v1254
        %v1264 = vsel %vm1242, %v1121, %v1260
        %v1265 = vsel %vm1242, %v1126, %v1261
        %v1266 = vsel %vm1242, %v1131, %v1262
        %v1267 = vsel %vm1242, %v1136, %v1263
        %1268 = vset.pattern.permute.xlu0 5
        %1269 = vperm.xlu0 %1268, %v178
        %v1270 = vpop.permute.xlu0 %1269
        %1272 = vset.pattern.permute.xlu0 5
        %1273 = vperm.xlu0 %1272, %v179
        %v1274 = vpop.permute.xlu0 %1273
        %1276 = vset.pattern.permute.xlu0 5
        %1277 = vperm.xlu0 %1276, %v180
        %v1278 = vpop.permute.xlu0 %1277
        %1280 = vset.pattern.permute.xlu0 5
        %1281 = vperm.xlu0 %1280, %v181
        %v1282 = vpop.permute.xlu0 %1281
        %v1284 = vadd.f32 %v1264, %v1270
        %v1285 = vadd.f32 %v1265, %v1274
        %v1286 = vadd.f32 %v1266, %v1278
        %v1287 = vadd.f32 %v1267, %v1282
        %s1288 = scalar_lea.vmem [#allocation4], 288
        %v1289 = vld [vmem:[%s1288] sm:$0xff]
        %v1290 = vld [vmem:[%s1288 + $0x8] sm:$0xff]
        %v1291 = vld [vmem:[%s1288 + $0x10] sm:$0xff]
        %v1292 = vld [vmem:[%s1288 + $0x18] sm:$0xff]
        %s1293 = scalar_lea.vmem [#allocation4], 320
        %v1294 = vld [vmem:[%s1293] sm:$0xff]
        %v1295 = vld [vmem:[%s1293 + $0x8] sm:$0xff]
        %v1296 = vld [vmem:[%s1293 + $0x10] sm:$0xff]
        %v1297 = vld [vmem:[%s1293 + $0x18] sm:$0xff]
        %v1299 = vsel %vm341, %v1294, 0
        %v1302 = vsel %vm341, %v1295, 0
        %v1305 = vsel %vm341, %v1296, 0
        %v1308 = vsel %vm341, %v1297, 0
        %1310 = vmatprep.subr.mxu0 0.0
        %1311 = vmatpush1.msra.mxu0 0.0
        %1312 = vmatprep.subr.mxu0 0.0
        %1313 = vmatpush1.msra.mxu0 0.0
        %1314 = vmatprep.subr.mxu0 0.0
        %1315 = vmatpush1.msra.mxu0 0.0
        %1316 = vmatprep.subr.mxu0 0.0
        %1317 = vmatpush1.msra.mxu0 0.0
        %1318 = vmatprep.subr.mxu0 0.0
        %1319 = vmatpush1.msra.mxu0 0.0
        %1320 = vmatprep.subr.mxu0 0.0
        %1321 = vmatpush1.msra.mxu0 0.0
        %1322 = vmatprep.subr.mxu0 0.0
        %1323 = vmatpush1.msra.mxu0 0.0
        %1324 = vmatprep.subr.mxu0 0.0
        %1325 = vmatpush1.msra.mxu0 0.0
        %1326 = vmatprep.subr.mxu0 0.0
        %1327 = vmatpush1.msra.mxu0 0.0
        %1328 = vmatprep.subr.mxu0 0.0
        %1329 = vmatpush1.msra.mxu0 0.0
        %1330 = vmatprep.subr.mxu0 0.0
        %1331 = vmatpush1.msra.mxu0 0.0
        %1332 = vmatprep.subr.mxu0 0.0
        %1333 = vmatpush1.msra.mxu0 0.0
        %1334 = vmatprep.subr.mxu0 0.0
        %1335 = vmatpush1.msra.mxu0 %v671
        %1336 = vmatprep.subr.mxu0 0.0
        %1337 = vmatpush1.msra.mxu0 %v666
        %1338 = vmatprep.subr.mxu0 0.0
        %1339 = vmatpush1.msra.mxu0 %v661
        %1340 = vmatprep.subr.mxu0 0.0
        %1341 = vmatpush1.msra.mxu0 %v656
        %1342 = vmatprep.subr.mxu0 0.0
        %1343 = vmatpush2.msra.mxu0 0.0
        %1344 = vmatprep.subr.mxu0 0.0
        %1345 = vmatpush2.msra.mxu0 0.0
        %1346 = vmatprep.subr.mxu0 0.0
        %1347 = vmatpush2.msra.mxu0 0.0
        %1348 = vmatprep.subr.mxu0 0.0
        %1349 = vmatpush2.msra.mxu0 0.0
        %1350 = vmatprep.subr.mxu0 0.0
        %1351 = vmatpush2.msra.mxu0 0.0
        %1352 = vmatprep.subr.mxu0 0.0
        %1353 = vmatpush2.msra.mxu0 0.0
        %1354 = vmatprep.subr.mxu0 0.0
        %1355 = vmatpush2.msra.mxu0 0.0
        %1356 = vmatprep.subr.mxu0 0.0
        %1357 = vmatpush2.msra.mxu0 0.0
        %1358 = vmatprep.subr.mxu0 0.0
        %1359 = vmatpush2.msra.mxu0 0.0
        %1360 = vmatprep.subr.mxu0 0.0
        %1361 = vmatpush2.msra.mxu0 0.0
        %1362 = vmatprep.subr.mxu0 0.0
        %1363 = vmatpush2.msra.mxu0 0.0
        %1364 = vmatprep.subr.mxu0 0.0
        %1365 = vmatpush2.msra.mxu0 0.0
        %1366 = vmatprep.subr.mxu0 0.0
        %1367 = vmatpush2.msra.mxu0 0.0
        %1368 = vmatprep.subr.mxu0 0.0
        %1369 = vmatpush2.msra.mxu0 0.0
        %1370 = vmatprep.subr.mxu0 0.0
        %1371 = vmatpush2.msra.mxu0 0.0
        %1372 = vmatprep.subr.mxu0 0.0
        %1373 = vmatpush2.msra.mxu0 0.0
        %1374 = vmatprep.mubr.f32.mxu0 0.0
        %1375 = vmatmul.mubr.f32.gmra.mxu0 %v1299
        %v1376 = vpop.f32.mrf.mxu0
        %v1377 = vadd.f32 0.0, %v1376
        %v1378 = vpop.f32.mrf.mxu0
        %1379 = vmatprep.mubr.f32.mxu0 0.0
        %1380 = vmatmul.mubr.f32.gmra.mxu0 %v1302
        %v1381 = vpop.f32.mrf.mxu0
        %v1382 = vadd.f32 0.0, %v1381
        %v1383 = vpop.f32.mrf.mxu0
        %1384 = vmatprep.mubr.f32.mxu0 0.0
        %1385 = vmatmul.mubr.f32.gmra.mxu0 %v1305
        %v1386 = vpop.f32.mrf.mxu0
        %v1387 = vadd.f32 0.0, %v1386
        %v1388 = vpop.f32.mrf.mxu0
        %1389 = vmatprep.mubr.f32.mxu0 0.0
        %1390 = vmatmul.mubr.f32.gmra.mxu0 %v1308
        %v1391 = vpop.f32.mrf.mxu0
        %v1392 = vadd.f32 0.0, %v1391
        %v1393 = vpop.f32.mrf.mxu0
        %1394 = vdwg.mxu0
        %v1396 = vsel %vm341, %v1289, 0
        %v1399 = vsel %vm341, %v1290, 0
        %v1402 = vsel %vm341, %v1291, 0
        %v1405 = vsel %vm341, %v1292, 0
        %1407 = vmatprep.subr.mxu0 0.0
        %1408 = vmatpush1.msra.mxu0 0.0
        %1409 = vmatprep.subr.mxu0 0.0
        %1410 = vmatpush1.msra.mxu0 0.0
        %1411 = vmatprep.subr.mxu0 0.0
        %1412 = vmatpush1.msra.mxu0 0.0
        %1413 = vmatprep.subr.mxu0 0.0
        %1414 = vmatpush1.msra.mxu0 0.0
        %1415 = vmatprep.subr.mxu0 0.0
        %1416 = vmatpush1.msra.mxu0 0.0
        %1417 = vmatprep.subr.mxu0 0.0
        %1418 = vmatpush1.msra.mxu0 0.0
        %1419 = vmatprep.subr.mxu0 0.0
        %1420 = vmatpush1.msra.mxu0 0.0
        %1421 = vmatprep.subr.mxu0 0.0
        %1422 = vmatpush1.msra.mxu0 0.0
        %1423 = vmatprep.subr.mxu0 0.0
        %1424 = vmatpush1.msra.mxu0 0.0
        %1425 = vmatprep.subr.mxu0 0.0
        %1426 = vmatpush1.msra.mxu0 0.0
        %1427 = vmatprep.subr.mxu0 0.0
        %1428 = vmatpush1.msra.mxu0 0.0
        %1429 = vmatprep.subr.mxu0 0.0
        %1430 = vmatpush1.msra.mxu0 0.0
        %1431 = vmatprep.subr.mxu0 0.0
        %1432 = vmatpush1.msra.mxu0 %v1287
        %1433 = vmatprep.subr.mxu0 0.0
        %1434 = vmatpush1.msra.mxu0 %v1286
        %1435 = vmatprep.subr.mxu0 0.0
        %1436 = vmatpush1.msra.mxu0 %v1285
        %1437 = vmatprep.subr.mxu0 0.0
        %1438 = vmatpush1.msra.mxu0 %v1284
        %1439 = vmatprep.subr.mxu0 0.0
        %1440 = vmatpush2.msra.mxu0 0.0
        %1441 = vmatprep.subr.mxu0 0.0
        %1442 = vmatpush2.msra.mxu0 0.0
        %1443 = vmatprep.subr.mxu0 0.0
        %1444 = vmatpush2.msra.mxu0 0.0
        %1445 = vmatprep.subr.mxu0 0.0
        %1446 = vmatpush2.msra.mxu0 0.0
        %1447 = vmatprep.subr.mxu0 0.0
        %1448 = vmatpush2.msra.mxu0 0.0
        %1449 = vmatprep.subr.mxu0 0.0
        %1450 = vmatpush2.msra.mxu0 0.0
        %1451 = vmatprep.subr.mxu0 0.0
        %1452 = vmatpush2.msra.mxu0 0.0
        %1453 = vmatprep.subr.mxu0 0.0
        %1454 = vmatpush2.msra.mxu0 0.0
        %1455 = vmatprep.subr.mxu0 0.0
        %1456 = vmatpush2.msra.mxu0 0.0
        %1457 = vmatprep.subr.mxu0 0.0
        %1458 = vmatpush2.msra.mxu0 0.0
        %1459 = vmatprep.subr.mxu0 0.0
        %1460 = vmatpush2.msra.mxu0 0.0
        %1461 = vmatprep.subr.mxu0 0.0
        %1462 = vmatpush2.msra.mxu0 0.0
        %1463 = vmatprep.subr.mxu0 0.0
        %1464 = vmatpush2.msra.mxu0 0.0
        %1465 = vmatprep.subr.mxu0 0.0
        %1466 = vmatpush2.msra.mxu0 0.0
        %1467 = vmatprep.subr.mxu0 0.0
        %1468 = vmatpush2.msra.mxu0 0.0
        %1469 = vmatprep.subr.mxu0 0.0
        %1470 = vmatpush2.msra.mxu0 0.0
        %1471 = vmatprep.mubr.f32.mxu0 0.0
        %1472 = vmatmul.mubr.f32.gmra.mxu0 %v1396
        %v1473 = vpop.f32.mrf.mxu0
        %v1474 = vadd.f32 %v1377, %v1473
        %v1475 = vpop.f32.mrf.mxu0
        %1476 = vmatprep.mubr.f32.mxu0 0.0
        %1477 = vmatmul.mubr.f32.gmra.mxu0 %v1399
        %v1478 = vpop.f32.mrf.mxu0
        %v1479 = vadd.f32 %v1382, %v1478
        %v1480 = vpop.f32.mrf.mxu0
        %1481 = vmatprep.mubr.f32.mxu0 0.0
        %1482 = vmatmul.mubr.f32.gmra.mxu0 %v1402
        %v1483 = vpop.f32.mrf.mxu0
        %v1484 = vadd.f32 %v1387, %v1483
        %v1485 = vpop.f32.mrf.mxu0
        %1486 = vmatprep.mubr.f32.mxu0 0.0
        %1487 = vmatmul.mubr.f32.gmra.mxu0 %v1405
        %v1488 = vpop.f32.mrf.mxu0
        %v1489 = vadd.f32 %v1392, %v1488
        %v1490 = vpop.f32.mrf.mxu0
        %1491 = vdwg.mxu0
        %1492 = vset.pattern.permute.xlu0 6
        %1493 = vperm.xlu0 %1492, %v178
        %v1494 = vpop.permute.xlu0 %1493
        %1496 = vset.pattern.permute.xlu0 6
        %1497 = vperm.xlu0 %1496, %v179
        %v1498 = vpop.permute.xlu0 %1497
        %1500 = vset.pattern.permute.xlu0 6
        %1501 = vperm.xlu0 %1500, %v180
        %v1502 = vpop.permute.xlu0 %1501
        %1504 = vset.pattern.permute.xlu0 6
        %1505 = vperm.xlu0 %1504, %v181
        %v1506 = vpop.permute.xlu0 %1505
        %v1508 = vadd.f32 %v1474, %v1494
        %v1509 = vadd.f32 %v1479, %v1498
        %v1510 = vadd.f32 %v1484, %v1502
        %v1511 = vadd.f32 %v1489, %v1506
        %s1512 = scalar_lea.vmem [#allocation4], 352
        %v1513 = vld [vmem:[%s1512] sm:$0xff]
        %v1514 = vld [vmem:[%s1512 + $0x8] sm:$0xff]
        %v1515 = vld [vmem:[%s1512 + $0x10] sm:$0xff]
        %v1516 = vld [vmem:[%s1512 + $0x18] sm:$0xff]
        %v1518 = vsel %vm341, %v1513, 0
        %v1521 = vsel %vm341, %v1514, 0
        %v1524 = vsel %vm341, %v1515, 0
        %v1527 = vsel %vm341, %v1516, 0
        %1529 = vmatprep.subr.mxu0 0.0
        %1530 = vmatpush1.msra.mxu0 0.0
        %1531 = vmatprep.subr.mxu0 0.0
        %1532 = vmatpush1.msra.mxu0 0.0
        %1533 = vmatprep.subr.mxu0 0.0
        %1534 = vmatpush1.msra.mxu0 0.0
        %1535 = vmatprep.subr.mxu0 0.0
        %1536 = vmatpush1.msra.mxu0 0.0
        %1537 = vmatprep.subr.mxu0 0.0
        %1538 = vmatpush1.msra.mxu0 0.0
        %1539 = vmatprep.subr.mxu0 0.0
        %1540 = vmatpush1.msra.mxu0 0.0
        %1541 = vmatprep.subr.mxu0 0.0
        %1542 = vmatpush1.msra.mxu0 0.0
        %1543 = vmatprep.subr.mxu0 0.0
        %1544 = vmatpush1.msra.mxu0 0.0
        %1545 = vmatprep.subr.mxu0 0.0
        %1546 = vmatpush1.msra.mxu0 0.0
        %1547 = vmatprep.subr.mxu0 0.0
        %1548 = vmatpush1.msra.mxu0 0.0
        %1549 = vmatprep.subr.mxu0 0.0
        %1550 = vmatpush1.msra.mxu0 0.0
        %1551 = vmatprep.subr.mxu0 0.0
        %1552 = vmatpush1.msra.mxu0 0.0
        %1553 = vmatprep.subr.mxu0 0.0
        %1554 = vmatpush1.msra.mxu0 %v1511
        %1555 = vmatprep.subr.mxu0 0.0
        %1556 = vmatpush1.msra.mxu0 %v1510
        %1557 = vmatprep.subr.mxu0 0.0
        %1558 = vmatpush1.msra.mxu0 %v1509
        %1559 = vmatprep.subr.mxu0 0.0
        %1560 = vmatpush1.msra.mxu0 %v1508
        %1561 = vmatprep.subr.mxu0 0.0
        %1562 = vmatpush2.msra.mxu0 0.0
        %1563 = vmatprep.subr.mxu0 0.0
        %1564 = vmatpush2.msra.mxu0 0.0
        %1565 = vmatprep.subr.mxu0 0.0
        %1566 = vmatpush2.msra.mxu0 0.0
        %1567 = vmatprep.subr.mxu0 0.0
        %1568 = vmatpush2.msra.mxu0 0.0
        %1569 = vmatprep.subr.mxu0 0.0
        %1570 = vmatpush2.msra.mxu0 0.0
        %1571 = vmatprep.subr.mxu0 0.0
        %1572 = vmatpush2.msra.mxu0 0.0
        %1573 = vmatprep.subr.mxu0 0.0
        %1574 = vmatpush2.msra.mxu0 0.0
        %1575 = vmatprep.subr.mxu0 0.0
        %1576 = vmatpush2.msra.mxu0 0.0
        %1577 = vmatprep.subr.mxu0 0.0
        %1578 = vmatpush2.msra.mxu0 0.0
        %1579 = vmatprep.subr.mxu0 0.0
        %1580 = vmatpush2.msra.mxu0 0.0
        %1581 = vmatprep.subr.mxu0 0.0
        %1582 = vmatpush2.msra.mxu0 0.0
        %1583 = vmatprep.subr.mxu0 0.0
        %1584 = vmatpush2.msra.mxu0 0.0
        %1585 = vmatprep.subr.mxu0 0.0
        %1586 = vmatpush2.msra.mxu0 0.0
        %1587 = vmatprep.subr.mxu0 0.0
        %1588 = vmatpush2.msra.mxu0 0.0
        %1589 = vmatprep.subr.mxu0 0.0
        %1590 = vmatpush2.msra.mxu0 0.0
        %1591 = vmatprep.subr.mxu0 0.0
        %1592 = vmatpush2.msra.mxu0 0.0
        %1593 = vmatprep.mubr.f32.mxu0 0.0
        %1594 = vmatmul.mubr.f32.gmra.mxu0 %v1518
        %v1595 = vpop.f32.mrf.mxu0
        %v1596 = vadd.f32 0.0, %v1595
        %v1597 = vpop.f32.mrf.mxu0
        %1598 = vmatprep.mubr.f32.mxu0 0.0
        %1599 = vmatmul.mubr.f32.gmra.mxu0 %v1521
        %v1600 = vpop.f32.mrf.mxu0
        %v1601 = vadd.f32 0.0, %v1600
        %v1602 = vpop.f32.mrf.mxu0
        %1603 = vmatprep.mubr.f32.mxu0 0.0
        %1604 = vmatmul.mubr.f32.gmra.mxu0 %v1524
        %v1605 = vpop.f32.mrf.mxu0
        %v1606 = vadd.f32 0.0, %v1605
        %v1607 = vpop.f32.mrf.mxu0
        %1608 = vmatprep.mubr.f32.mxu0 0.0
        %1609 = vmatmul.mubr.f32.gmra.mxu0 %v1527
        %v1610 = vpop.f32.mrf.mxu0
        %v1611 = vadd.f32 0.0, %v1610
        %v1612 = vpop.f32.mrf.mxu0
        %1613 = vdwg.mxu0
        %s1614 = scalar_lea.vmem [#allocation4], 384
        %v1615 = vld [vmem:[%s1614] sm:$0xff]
        %v1616 = vld [vmem:[%s1614 + $0x8] sm:$0xff]
        %v1617 = vld [vmem:[%s1614 + $0x10] sm:$0xff]
        %v1618 = vld [vmem:[%s1614 + $0x18] sm:$0xff]
        %v1620 = vsel %vm341, %v1615, 0
        %v1623 = vsel %vm341, %v1616, 0
        %v1626 = vsel %vm341, %v1617, 0
        %v1629 = vsel %vm341, %v1618, 0
        %1631 = vmatprep.subr.mxu0 0.0
        %1632 = vmatpush1.msra.mxu0 0.0
        %1633 = vmatprep.subr.mxu0 0.0
        %1634 = vmatpush1.msra.mxu0 0.0
        %1635 = vmatprep.subr.mxu0 0.0
        %1636 = vmatpush1.msra.mxu0 0.0
        %1637 = vmatprep.subr.mxu0 0.0
        %1638 = vmatpush1.msra.mxu0 0.0
        %1639 = vmatprep.subr.mxu0 0.0
        %1640 = vmatpush1.msra.mxu0 0.0
        %1641 = vmatprep.subr.mxu0 0.0
        %1642 = vmatpush1.msra.mxu0 0.0
        %1643 = vmatprep.subr.mxu0 0.0
        %1644 = vmatpush1.msra.mxu0 0.0
        %1645 = vmatprep.subr.mxu0 0.0
        %1646 = vmatpush1.msra.mxu0 0.0
        %1647 = vmatprep.subr.mxu0 0.0
        %1648 = vmatpush1.msra.mxu0 0.0
        %1649 = vmatprep.subr.mxu0 0.0
        %1650 = vmatpush1.msra.mxu0 0.0
        %1651 = vmatprep.subr.mxu0 0.0
        %1652 = vmatpush1.msra.mxu0 0.0
        %1653 = vmatprep.subr.mxu0 0.0
        %1654 = vmatpush1.msra.mxu0 0.0
        %1655 = vmatprep.subr.mxu0 0.0
        %1656 = vmatpush1.msra.mxu0 %v1511
        %1657 = vmatprep.subr.mxu0 0.0
        %1658 = vmatpush1.msra.mxu0 %v1510
        %1659 = vmatprep.subr.mxu0 0.0
        %1660 = vmatpush1.msra.mxu0 %v1509
        %1661 = vmatprep.subr.mxu0 0.0
        %1662 = vmatpush1.msra.mxu0 %v1508
        %1663 = vmatprep.subr.mxu0 0.0
        %1664 = vmatpush2.msra.mxu0 0.0
        %1665 = vmatprep.subr.mxu0 0.0
        %1666 = vmatpush2.msra.mxu0 0.0
        %1667 = vmatprep.subr.mxu0 0.0
        %1668 = vmatpush2.msra.mxu0 0.0
        %1669 = vmatprep.subr.mxu0 0.0
        %1670 = vmatpush2.msra.mxu0 0.0
        %1671 = vmatprep.subr.mxu0 0.0
        %1672 = vmatpush2.msra.mxu0 0.0
        %1673 = vmatprep.subr.mxu0 0.0
        %1674 = vmatpush2.msra.mxu0 0.0
        %1675 = vmatprep.subr.mxu0 0.0
        %1676 = vmatpush2.msra.mxu0 0.0
        %1677 = vmatprep.subr.mxu0 0.0
        %1678 = vmatpush2.msra.mxu0 0.0
        %1679 = vmatprep.subr.mxu0 0.0
        %1680 = vmatpush2.msra.mxu0 0.0
        %1681 = vmatprep.subr.mxu0 0.0
        %1682 = vmatpush2.msra.mxu0 0.0
        %1683 = vmatprep.subr.mxu0 0.0
        %1684 = vmatpush2.msra.mxu0 0.0
        %1685 = vmatprep.subr.mxu0 0.0
        %1686 = vmatpush2.msra.mxu0 0.0
        %1687 = vmatprep.subr.mxu0 0.0
        %1688 = vmatpush2.msra.mxu0 0.0
        %1689 = vmatprep.subr.mxu0 0.0
        %1690 = vmatpush2.msra.mxu0 0.0
        %1691 = vmatprep.subr.mxu0 0.0
        %1692 = vmatpush2.msra.mxu0 0.0
        %1693 = vmatprep.subr.mxu0 0.0
        %1694 = vmatpush2.msra.mxu0 0.0
        %1695 = vmatprep.mubr.f32.mxu0 0.0
        %1696 = vmatmul.mubr.f32.gmra.mxu0 %v1620
        %v1697 = vpop.f32.mrf.mxu0
        %v1698 = vadd.f32 0.0, %v1697
        %v1699 = vpop.f32.mrf.mxu0
        %1700 = vmatprep.mubr.f32.mxu0 0.0
        %1701 = vmatmul.mubr.f32.gmra.mxu0 %v1623
        %v1702 = vpop.f32.mrf.mxu0
        %v1703 = vadd.f32 0.0, %v1702
        %v1704 = vpop.f32.mrf.mxu0
        %1705 = vmatprep.mubr.f32.mxu0 0.0
        %1706 = vmatmul.mubr.f32.gmra.mxu0 %v1626
        %v1707 = vpop.f32.mrf.mxu0
        %v1708 = vadd.f32 0.0, %v1707
        %v1709 = vpop.f32.mrf.mxu0
        %1710 = vmatprep.mubr.f32.mxu0 0.0
        %1711 = vmatmul.mubr.f32.gmra.mxu0 %v1629
        %v1712 = vpop.f32.mrf.mxu0
        %v1713 = vadd.f32 0.0, %v1712
        %v1714 = vpop.f32.mrf.mxu0
        %1715 = vdwg.mxu0
        %v1716 = vand.u32 %v183, 1
        %vm1717 = vcmp.eq.s32.totalorder %v1716, 0
        %1722 = vrot.lane.b32.xlu0 %v1698, 1
        %v1723 = vpop.permute.xlu0 %1722
        %1724 = vrot.lane.b32.xlu0 %v1703, 1
        %v1725 = vpop.permute.xlu0 %1724
        %1726 = vrot.lane.b32.xlu0 %v1708, 1
        %v1727 = vpop.permute.xlu0 %1726
        %1728 = vrot.lane.b32.xlu0 %v1713, 1
        %v1729 = vpop.permute.xlu0 %1728
        %vm1734 = vcmask 7168
        %v1735 = vsel %vm1734, 0.0, %v1723
        %v1736 = vsel %vm1734, 0.0, %v1725
        %v1737 = vsel %vm1734, 0.0, %v1727
        %v1738 = vsel %vm1734, 0.0, %v1729
        %v1739 = vsel %vm1717, %v1596, %v1735
        %v1740 = vsel %vm1717, %v1601, %v1736
        %v1741 = vsel %vm1717, %v1606, %v1737
        %v1742 = vsel %vm1717, %v1611, %v1738
        %1743 = vset.pattern.permute.xlu0 7
        %1744 = vperm.xlu0 %1743, %v178
        %v1745 = vpop.permute.xlu0 %1744
        %1747 = vset.pattern.permute.xlu0 7
        %1748 = vperm.xlu0 %1747, %v179
        %v1749 = vpop.permute.xlu0 %1748
        %1751 = vset.pattern.permute.xlu0 7
        %1752 = vperm.xlu0 %1751, %v180
        %v1753 = vpop.permute.xlu0 %1752
        %1755 = vset.pattern.permute.xlu0 7
        %1756 = vperm.xlu0 %1755, %v181
        %v1757 = vpop.permute.xlu0 %1756
        %v1759 = vadd.f32 %v1739, %v1745
        %v1760 = vadd.f32 %v1740, %v1749
        %v1761 = vadd.f32 %v1741, %v1753
        %v1762 = vadd.f32 %v1742, %v1757
        %s1763 = scalar_lea.vmem [#allocation4], 416
        %v1764 = vld [vmem:[%s1763] sm:$0xff]
        %v1765 = vld [vmem:[%s1763 + $0x8] sm:$0xff]
        %v1766 = vld [vmem:[%s1763 + $0x10] sm:$0xff]
        %v1767 = vld [vmem:[%s1763 + $0x18] sm:$0xff]
        %s1768 = scalar_lea.vmem [#allocation4], 448
        %v1769 = vld [vmem:[%s1768] sm:$0xff]
        %v1770 = vld [vmem:[%s1768 + $0x8] sm:$0xff]
        %v1771 = vld [vmem:[%s1768 + $0x10] sm:$0xff]
        %v1772 = vld [vmem:[%s1768 + $0x18] sm:$0xff]
        %v1774 = vsel %vm341, %v1769, 0
        %v1777 = vsel %vm341, %v1770, 0
        %v1780 = vsel %vm341, %v1771, 0
        %v1783 = vsel %vm341, %v1772, 0
        %1785 = vmatprep.subr.mxu0 0.0
        %1786 = vmatpush1.msra.mxu0 0.0
        %1787 = vmatprep.subr.mxu0 0.0
        %1788 = vmatpush1.msra.mxu0 0.0
        %1789 = vmatprep.subr.mxu0 0.0
        %1790 = vmatpush1.msra.mxu0 0.0
        %1791 = vmatprep.subr.mxu0 0.0
        %1792 = vmatpush1.msra.mxu0 0.0
        %1793 = vmatprep.subr.mxu0 0.0
        %1794 = vmatpush1.msra.mxu0 0.0
        %1795 = vmatprep.subr.mxu0 0.0
        %1796 = vmatpush1.msra.mxu0 0.0
        %1797 = vmatprep.subr.mxu0 0.0
        %1798 = vmatpush1.msra.mxu0 0.0
        %1799 = vmatprep.subr.mxu0 0.0
        %1800 = vmatpush1.msra.mxu0 0.0
        %1801 = vmatprep.subr.mxu0 0.0
        %1802 = vmatpush1.msra.mxu0 0.0
        %1803 = vmatprep.subr.mxu0 0.0
        %1804 = vmatpush1.msra.mxu0 0.0
        %1805 = vmatprep.subr.mxu0 0.0
        %1806 = vmatpush1.msra.mxu0 0.0
        %1807 = vmatprep.subr.mxu0 0.0
        %1808 = vmatpush1.msra.mxu0 0.0
        %1809 = vmatprep.subr.mxu0 0.0
        %1810 = vmatpush1.msra.mxu0 %v307
        %1811 = vmatprep.subr.mxu0 0.0
        %1812 = vmatpush1.msra.mxu0 %v302
        %1813 = vmatprep.subr.mxu0 0.0
        %1814 = vmatpush1.msra.mxu0 %v297
        %1815 = vmatprep.subr.mxu0 0.0
        %1816 = vmatpush1.msra.mxu0 %v292
        %1817 = vmatprep.subr.mxu0 0.0
        %1818 = vmatpush2.msra.mxu0 0.0
        %1819 = vmatprep.subr.mxu0 0.0
        %1820 = vmatpush2.msra.mxu0 0.0
        %1821 = vmatprep.subr.mxu0 0.0
        %1822 = vmatpush2.msra.mxu0 0.0
        %1823 = vmatprep.subr.mxu0 0.0
        %1824 = vmatpush2.msra.mxu0 0.0
        %1825 = vmatprep.subr.mxu0 0.0
        %1826 = vmatpush2.msra.mxu0 0.0
        %1827 = vmatprep.subr.mxu0 0.0
        %1828 = vmatpush2.msra.mxu0 0.0
        %1829 = vmatprep.subr.mxu0 0.0
        %1830 = vmatpush2.msra.mxu0 0.0
        %1831 = vmatprep.subr.mxu0 0.0
        %1832 = vmatpush2.msra.mxu0 0.0
        %1833 = vmatprep.subr.mxu0 0.0
        %1834 = vmatpush2.msra.mxu0 0.0
        %1835 = vmatprep.subr.mxu0 0.0
        %1836 = vmatpush2.msra.mxu0 0.0
        %1837 = vmatprep.subr.mxu0 0.0
        %1838 = vmatpush2.msra.mxu0 0.0
        %1839 = vmatprep.subr.mxu0 0.0
        %1840 = vmatpush2.msra.mxu0 0.0
        %1841 = vmatprep.subr.mxu0 0.0
        %1842 = vmatpush2.msra.mxu0 0.0
        %1843 = vmatprep.subr.mxu0 0.0
        %1844 = vmatpush2.msra.mxu0 0.0
        %1845 = vmatprep.subr.mxu0 0.0
        %1846 = vmatpush2.msra.mxu0 0.0
        %1847 = vmatprep.subr.mxu0 0.0
        %1848 = vmatpush2.msra.mxu0 0.0
        %1849 = vmatprep.mubr.f32.mxu0 0.0
        %1850 = vmatmul.mubr.f32.gmra.mxu0 %v1774
        %v1851 = vpop.f32.mrf.mxu0
        %v1852 = vadd.f32 0.0, %v1851
        %v1853 = vpop.f32.mrf.mxu0
        %1854 = vmatprep.mubr.f32.mxu0 0.0
        %1855 = vmatmul.mubr.f32.gmra.mxu0 %v1777
        %v1856 = vpop.f32.mrf.mxu0
        %v1857 = vadd.f32 0.0, %v1856
        %v1858 = vpop.f32.mrf.mxu0
        %1859 = vmatprep.mubr.f32.mxu0 0.0
        %1860 = vmatmul.mubr.f32.gmra.mxu0 %v1780
        %v1861 = vpop.f32.mrf.mxu0
        %v1862 = vadd.f32 0.0, %v1861
        %v1863 = vpop.f32.mrf.mxu0
        %1864 = vmatprep.mubr.f32.mxu0 0.0
        %1865 = vmatmul.mubr.f32.gmra.mxu0 %v1783
        %v1866 = vpop.f32.mrf.mxu0
        %v1867 = vadd.f32 0.0, %v1866
        %v1868 = vpop.f32.mrf.mxu0
        %1869 = vdwg.mxu0
        %v1871 = vsel %vm341, %v1764, 0
        %v1874 = vsel %vm341, %v1765, 0
        %v1877 = vsel %vm341, %v1766, 0
        %v1880 = vsel %vm341, %v1767, 0
        %1882 = vmatprep.subr.mxu0 0.0
        %1883 = vmatpush1.msra.mxu0 0.0
        %1884 = vmatprep.subr.mxu0 0.0
        %1885 = vmatpush1.msra.mxu0 0.0
        %1886 = vmatprep.subr.mxu0 0.0
        %1887 = vmatpush1.msra.mxu0 0.0
        %1888 = vmatprep.subr.mxu0 0.0
        %1889 = vmatpush1.msra.mxu0 0.0
        %1890 = vmatprep.subr.mxu0 0.0
        %1891 = vmatpush1.msra.mxu0 0.0
        %1892 = vmatprep.subr.mxu0 0.0
        %1893 = vmatpush1.msra.mxu0 0.0
        %1894 = vmatprep.subr.mxu0 0.0
        %1895 = vmatpush1.msra.mxu0 0.0
        %1896 = vmatprep.subr.mxu0 0.0
        %1897 = vmatpush1.msra.mxu0 0.0
        %1898 = vmatprep.subr.mxu0 0.0
        %1899 = vmatpush1.msra.mxu0 0.0
        %1900 = vmatprep.subr.mxu0 0.0
        %1901 = vmatpush1.msra.mxu0 0.0
        %1902 = vmatprep.subr.mxu0 0.0
        %1903 = vmatpush1.msra.mxu0 0.0
        %1904 = vmatprep.subr.mxu0 0.0
        %1905 = vmatpush1.msra.mxu0 0.0
        %1906 = vmatprep.subr.mxu0 0.0
        %1907 = vmatpush1.msra.mxu0 %v1762
        %1908 = vmatprep.subr.mxu0 0.0
        %1909 = vmatpush1.msra.mxu0 %v1761
        %1910 = vmatprep.subr.mxu0 0.0
        %1911 = vmatpush1.msra.mxu0 %v1760
        %1912 = vmatprep.subr.mxu0 0.0
        %1913 = vmatpush1.msra.mxu0 %v1759
        %1914 = vmatprep.subr.mxu0 0.0
        %1915 = vmatpush2.msra.mxu0 0.0
        %1916 = vmatprep.subr.mxu0 0.0
        %1917 = vmatpush2.msra.mxu0 0.0
        %1918 = vmatprep.subr.mxu0 0.0
        %1919 = vmatpush2.msra.mxu0 0.0
        %1920 = vmatprep.subr.mxu0 0.0
        %1921 = vmatpush2.msra.mxu0 0.0
        %1922 = vmatprep.subr.mxu0 0.0
        %1923 = vmatpush2.msra.mxu0 0.0
        %1924 = vmatprep.subr.mxu0 0.0
        %1925 = vmatpush2.msra.mxu0 0.0
        %1926 = vmatprep.subr.mxu0 0.0
        %1927 = vmatpush2.msra.mxu0 0.0
        %1928 = vmatprep.subr.mxu0 0.0
        %1929 = vmatpush2.msra.mxu0 0.0
        %1930 = vmatprep.subr.mxu0 0.0
        %1931 = vmatpush2.msra.mxu0 0.0
        %1932 = vmatprep.subr.mxu0 0.0
        %1933 = vmatpush2.msra.mxu0 0.0
        %1934 = vmatprep.subr.mxu0 0.0
        %1935 = vmatpush2.msra.mxu0 0.0
        %1936 = vmatprep.subr.mxu0 0.0
        %1937 = vmatpush2.msra.mxu0 0.0
        %1938 = vmatprep.subr.mxu0 0.0
        %1939 = vmatpush2.msra.mxu0 0.0
        %1940 = vmatprep.subr.mxu0 0.0
        %1941 = vmatpush2.msra.mxu0 0.0
        %1942 = vmatprep.subr.mxu0 0.0
        %1943 = vmatpush2.msra.mxu0 0.0
        %1944 = vmatprep.subr.mxu0 0.0
        %1945 = vmatpush2.msra.mxu0 0.0
        %1946 = vmatprep.mubr.f32.mxu0 0.0
        %1947 = vmatmul.mubr.f32.gmra.mxu0 %v1871
        %v1948 = vpop.f32.mrf.mxu0
        %v1949 = vadd.f32 %v1852, %v1948
        %v1950 = vpop.f32.mrf.mxu0
        %1951 = vmatprep.mubr.f32.mxu0 0.0
        %1952 = vmatmul.mubr.f32.gmra.mxu0 %v1874
        %v1953 = vpop.f32.mrf.mxu0
        %v1954 = vadd.f32 %v1857, %v1953
        %v1955 = vpop.f32.mrf.mxu0
        %1956 = vmatprep.mubr.f32.mxu0 0.0
        %1957 = vmatmul.mubr.f32.gmra.mxu0 %v1877
        %v1958 = vpop.f32.mrf.mxu0
        %v1959 = vadd.f32 %v1862, %v1958
        %v1960 = vpop.f32.mrf.mxu0
        %1961 = vmatprep.mubr.f32.mxu0 0.0
        %1962 = vmatmul.mubr.f32.gmra.mxu0 %v1880
        %v1963 = vpop.f32.mrf.mxu0
        %v1964 = vadd.f32 %v1867, %v1963
        %v1965 = vpop.f32.mrf.mxu0
        %1966 = vdwg.mxu0
        %1967 = vset.pattern.permute.xlu0 8
        %1968 = vperm.xlu0 %1967, %v178
        %v1969 = vpop.permute.xlu0 %1968
        %1971 = vset.pattern.permute.xlu0 8
        %1972 = vperm.xlu0 %1971, %v179
        %v1973 = vpop.permute.xlu0 %1972
        %1975 = vset.pattern.permute.xlu0 8
        %1976 = vperm.xlu0 %1975, %v180
        %v1977 = vpop.permute.xlu0 %1976
        %1979 = vset.pattern.permute.xlu0 8
        %1980 = vperm.xlu0 %1979, %v181
        %v1981 = vpop.permute.xlu0 %1980
        %v1983 = vadd.f32 %v1949, %v1969
        %v1984 = vadd.f32 %v1954, %v1973
        %v1985 = vadd.f32 %v1959, %v1977
        %v1986 = vadd.f32 %v1964, %v1981
        %vm1987 = vcmask 130048
        %1988 = vst.msk [vmem:[%s175] sm:$0xff] %vm1987, %v1983
        %1989 = vst.msk [vmem:[%s175 + $0x8] sm:$0xff] %vm1987, %v1984
        %1990 = vst.msk [vmem:[%s175 + $0x10] sm:$0xff] %vm1987, %v1985
        %1991 = vst.msk [vmem:[%s175 + $0x18] sm:$0xff] %vm1987, %v1986
        %p1992 = scmp.lt.s32.totalorder %s17, 1
        %s1993 = scalar_select %p1992, %s17, 1
        %s1994 = smul.addr %s1993, 4
        %s1995 = smul.addr %s1994, 8
        %s1996 = scalar_lea.vmem %s2, %s1995
        // Predicated region
        $region37: #{forward.1} parent=27 // pred_check
          %p1997 = pneg %p82
        $region38: #{forward.1} parent=27 // pred_check_branch
          %1999 = sbr.rel (%p1997) target = $region40
        $region39: #{forward.1} parent=27 // pred_region
          _
        $region40: #{forward.1} parent=27 // pred_fallthru
          _
      $region28: #{forward.1} parent=5 // pred_fallthru
        _
      %p2000 = scmp.le.s32.totalorder 2, %s12
      // Predicated region
      $region41: #{forward.1} parent=5 // pred_check
        %p2001 = pneg %p2000
      $region42: #{forward.1} parent=5 // pred_check_branch
        %2003 = sbr.rel (%p2001) target = $region44
      $region43: #{forward.1} parent=5 // pred_region
        %s2004 = ssub.s32 %s12, 2
        // Predicated region
        $region45: #{forward.1} parent=43 // pred_check
          %p2005 = pneg %p88
        $region46: #{forward.1} parent=43 // pred_check_branch
          %2007 = sbr.rel (%p2005) target = $region48
        $region47: #{forward.1} parent=43 // pred_region
          %p2008 = scmp.lt.s32.totalorder %s18, 1
          %s2009 = scalar_select %p2008, %s18, 1
          %s2010 = smul.addr %s2009, 4
          %s2011 = smul.addr %s2010, 8
          %s2012 = scalar_lea.vmem %s2, %s2011
        $region48: #{forward.1} parent=43 // pred_fallthru
          _
      $region44: #{forward.1} parent=5 // pred_fallthru
        _
    $region6: #{forward.1} parent=1 // loop_footer
      %s16 = sadd.s32 1, %s12
    $region7: #{forward.1} parent=1 // loop_footer_branch
      %11 = sbr.rel target = $region3
    $region8: #{forward.1} parent=1 // loop_exit
      _
    %2013 = vsyncpa [#allocation3], 1
    %s2014 = scalar_lea.sflag [#allocation3], 1
    %2015 = vsyncpa %s2014, 1
    %2016 = vsyncpa [#allocation5], 1

</llo_original>
